<compile_context>
chip_gen: v6e
topology: v6e:2x2x1
jax: 0.10.0
libtpu: 0.0.40
codegen_flags: <defaults>
</compile_context>

<pallas_src>
import jax
import jax.numpy as jnp
from jax.experimental import pallas as pl
from jax.experimental.pallas import tpu as pltpu


def location_encoder_kernel(x_ref, w1_ref, b1_ref, w2_ref, b2_ref,
                            w3_ref, b3_ref, out_ref):
    # x_ref block: (Din, N, TB) -- batch tile on the lane axis.
    din, n_ped, tb = x_ref.shape
    hidden = w3_ref.shape[0]

    # (Din, N, TB) -> (Din, N*TB); tiny (Din=2 rows) relayout, columns are
    # (pedestrian-major, batch-minor) and stay on the lane axis from here on.
    x = x_ref[...].reshape(din, n_ped * tb)

    # ---- fc1 on the VPU: K = Din is tiny, keep it off the MXU -------------
    h = w1_ref[:, 0:1] * x[0:1, :]                       # (32, N*TB)
    for d in range(1, din):
        h = h + w1_ref[:, d:d + 1] * x[d:d + 1, :]
    h = jnp.maximum(h + b1_ref[...], 0.0)

    # ---- fc2 / fc3 on the MXU, W @ X orientation ---------------------------
    h = jnp.dot(w2_ref[...], h, preferred_element_type=jnp.float32) + b2_ref[...]
    h = jnp.maximum(h, 0.0)                              # (64, N*TB)
    h3 = jnp.dot(w3_ref[...], h, preferred_element_type=jnp.float32) + b3_ref[...]
    # h3: (H, N*TB), already batch-on-lane; no transpose needed.

    # ---- attention scores: symmetric pairwise dot products -----------------
    # cols[n] = hidden state of pedestrian n for all TB batch elements.
    cols = [h3[:, n * tb:(n + 1) * tb] for n in range(n_ped)]       # (H, TB) each
    dots = {}
    for i in range(n_ped):
        for j in range(i, n_ped):
            # sum over H (sublane reduction); (1, TB) per pair, 36 pairs total.
            dots[(i, j)] = jnp.sum(cols[i] * cols[j], axis=0, keepdims=True)
    rows = []
    for i in range(n_ped):
        rows.append(jnp.concatenate(
            [dots[(min(i, j), max(i, j))] for j in range(n_ped)], axis=0))  # (N, TB)
    s = jnp.stack(rows, axis=0)                          # (N, N, TB): s[i, j, b]

    # ---- softmax over j (axis=1), numerically stabilized --------------------
    s = s - jnp.max(s, axis=1, keepdims=True)
    e = jnp.exp(s)
    denom = jnp.sum(e, axis=1, keepdims=True)
    inv = pl.reciprocal(denom, approx=True)              # EUP slot, hides under exp
    inv = inv * (2.0 - denom * inv)                      # one Newton step -> f32 accuracy
    out_ref[0] = e * inv                                 # (N, N, TB): lane-dense store


# Target batch elements per grid step.  Per-step VMEM (double-buffered input
# and output blocks + the (32/64/H, N*TB) MLP intermediates + attention temps)
# is ~4-6 MiB at TB=512 -- under the scoped-VMEM defaults of v5e (16 MiB),
# v6e (32 MiB) and v7x (32 MiB) -- while amortizing the ~0.35 us/step grid
# overhead over 512 batch elements.
_TB_TARGET = 512


def _plan_batch(B):
    """Returns (padded batch Bp, lane tile TB per grid step)."""
    if B <= _TB_TARGET:
        # One grid step.  Pad the lane axis to a multiple of 128 for dense
        # (8,128) loads/stores; for very small batches just round to the
        # sublane multiple (padding to 128 would dominate the real work).
        Bp = 128 * pl.cdiv(B, 128) if B > 32 else 8 * pl.cdiv(B, 8)
        return Bp, Bp
    # Many grid steps: TB a multiple of 128 (dense stores) and an even step
    # count so the single "parallel" grid axis splits evenly over v7x's two
    # TensorCores (v5e/v6e have one core; fewer, bigger steps are fine there).
    G = max(2, 2 * pl.cdiv(B, 2 * _TB_TARGET))
    TB = 128 * pl.cdiv(pl.cdiv(B, G), 128)
    return G * TB, TB


def location_encoder(data, params, *, batch_tile=None):
    """data: (B, N, input_size) float32 -> (B, N, N) float32."""
    B, N, Din = data.shape
    w1, b1, w2, b2, w3, b3 = params

    if batch_tile is not None:
        TB = batch_tile
        G = pl.cdiv(B, TB)
        Bp = G * TB
    else:
        Bp, TB = _plan_batch(B)
        G = Bp // TB

    # Batch-on-lane layout (done once in XLA): (B, N, Din) -> (Din, N, Bp).
    data_t = jnp.transpose(data, (2, 1, 0))
    if Bp != B:
        data_t = jnp.pad(data_t, ((0, 0), (0, 0), (0, Bp - B)))

    # Weights stay in PyTorch (out, in) layout -- exactly what W @ X wants.
    # Biases become column vectors so they broadcast along the lane axis.
    b1c, b2c, b3c = b1.reshape(-1, 1), b2.reshape(-1, 1), b3.reshape(-1, 1)

    full = lambda a: pl.BlockSpec(a.shape, lambda g: (0,) * a.ndim)

    out_raw = pl.pallas_call(
        location_encoder_kernel,
        out_shape=jax.ShapeDtypeStruct((G, N, N, TB), jnp.float32),
        grid_spec=pltpu.PrefetchScalarGridSpec(
            num_scalar_prefetch=0,
            grid=(G,),
            in_specs=[
                pl.BlockSpec((Din, N, TB), lambda g: (0, 0, g)),   # data
                full(w1), full(b1c),                               # fc1
                full(w2), full(b2c),                               # fc2
                full(w3), full(b3c),                               # fc3
            ],
            out_specs=pl.BlockSpec((1, N, N, TB), lambda g: (g, 0, 0, 0)),
        ),
        compiler_params=pltpu.CompilerParams(
            dimension_semantics=("parallel",)),
    )(data_t, w1, b1c, w2, b2c, w3, b3c)

    # (G, N, N, TB) -> (Bp, N, N) -> (B, N, N): pure layout plumbing; drop if
    # the consumer can accept the (N, N, B) layout directly.
    out = jnp.transpose(out_raw, (0, 3, 1, 2)).reshape(Bp, N, N)
    return out[:B]


def init_params(key, input_size, hidden_size):
    """Deterministic Linear-style init (uniform in +-1/sqrt(fan_in))."""
    def linear(key, out_f, in_f):
        k_w, k_b = jax.random.split(key)
        bound = 1.0 / (in_f ** 0.5)
        w = jax.random.uniform(k_w, (out_f, in_f), jnp.float32, -bound, bound)
        b = jax.random.uniform(k_b, (1, out_f), jnp.float32, -bound, bound)
        return w, b

    k1, k2, k3 = jax.random.split(key, 3)
    w1, b1 = linear(k1, 32, input_size)
    w2, b2 = linear(k2, 64, 32)
    w3, b3 = linear(k3, hidden_size, 64)
    return w1, b1, w2, b2, w3, b3


def reference(data, params):
    w1, b1, w2, b2, w3, b3 = params
    h = jnp.maximum(data @ w1.T + b1[0], 0.0)
    h = jnp.maximum(h @ w2.T + b2[0], 0.0)
    h = h @ w3.T + b3[0]
    attn = jnp.einsum("bnd,bmd->bnm", h, h)
    attn = attn - jnp.max(attn, axis=2, keepdims=True)
    e = jnp.exp(attn)
    return e / jnp.sum(e, axis=2, keepdims=True)


if __name__ == "__main__":
    # Shapes consistent with the module: pedestrians=8, input_size=2 (x, y),
    # hidden_size=32.
    N, Din, H = 8, 2, 32
    key = jax.random.PRNGKey(0)
    k1, k2, k3, kp = jax.random.split(key, 4)
    params = init_params(kp, Din, H)

    # Case 1: tiny batch (batch=2) -- single grid step, masked lane tile.
    data_small = jax.random.normal(k1, (2, N, Din), jnp.float32)
    out_small = jax.block_until_ready(location_encoder(data_small, params))
    ref_small = reference(data_small, params)
    assert out_small.shape == (2, N, N)
    assert jnp.allclose(out_small, ref_small, atol=1e-4, rtol=1e-4), "mismatch (B=2)"

    # Case 2: batch=20 -- exercises lane padding (Bp=24) in a single step.
    data_med = jax.random.normal(k2, (20, N, Din), jnp.float32)
    out_med = jax.block_until_ready(location_encoder(data_med, params))
    ref_med = reference(data_med, params)
    assert out_med.shape == (20, N, N)
    assert jnp.allclose(out_med, ref_med, atol=1e-4, rtol=1e-4), "mismatch (B=20)"

    # Case 3: batch=256 with an explicit 128-wide tile -- exercises the
    # multi-step grid path with dense (8,128)-aligned blocks.
    data_big = jax.random.normal(k3, (256, N, Din), jnp.float32)
    out_big = jax.block_until_ready(
        location_encoder(data_big, params, batch_tile=128))
    ref_big = reference(data_big, params)
    assert out_big.shape == (256, N, N)
    assert jnp.allclose(out_big, ref_big, atol=1e-4, rtol=1e-4), "mismatch (B=256)"

    print("KERNEL_OK")
</pallas_src>

<mosaic_0001>
module attributes {stable_mosaic.version = 11 : i64} {
  func.func @location_encoder_kernel(%arg0: i32, %arg1: memref<2x8x8xf32, #tpu.memory_space<vmem>>, %arg2: memref<32x2xf32, #tpu.memory_space<vmem>>, %arg3: memref<32x1xf32, #tpu.memory_space<vmem>>, %arg4: memref<64x32xf32, #tpu.memory_space<vmem>>, %arg5: memref<64x1xf32, #tpu.memory_space<vmem>>, %arg6: memref<32x64xf32, #tpu.memory_space<vmem>>, %arg7: memref<32x1xf32, #tpu.memory_space<vmem>>, %arg8: memref<1x8x8x8xf32, #tpu.memory_space<vmem>>) attributes {dimension_semantics = [#tpu.dimension_semantics<parallel>], iteration_bounds = array<i64: 1>, scalar_prefetch = 0 : i64, scratch_operands = 0 : i64, tpu.core_type = #tpu.core_type<tc>, window_params = [{transform_indices = @transform_0, window_bounds = array<i64: 2, 8, 8>}, {pipeline_mode = #tpu.pipeline_mode<synchronous>, transform_indices = @transform_1, window_bounds = array<i64: 32, 2>}, {pipeline_mode = #tpu.pipeline_mode<synchronous>, transform_indices = @transform_2, window_bounds = array<i64: 32, 1>}, {pipeline_mode = #tpu.pipeline_mode<synchronous>, transform_indices = @transform_3, window_bounds = array<i64: 64, 32>}, {pipeline_mode = #tpu.pipeline_mode<synchronous>, transform_indices = @transform_4, window_bounds = array<i64: 64, 1>}, {pipeline_mode = #tpu.pipeline_mode<synchronous>, transform_indices = @transform_5, window_bounds = array<i64: 32, 64>}, {pipeline_mode = #tpu.pipeline_mode<synchronous>, transform_indices = @transform_6, window_bounds = array<i64: 32, 1>}, {transform_indices = @transform_7, window_bounds = array<i64: 1, 8, 8, 8>}]} {
    %c0 = arith.constant 0 : index
    %c0_0 = arith.constant 0 : index
    %c0_1 = arith.constant 0 : index
    %0 = vector.load %arg1[%c0, %c0_0, %c0_1] : memref<2x8x8xf32, #tpu.memory_space<vmem>>, vector<2x8x8xf32>
    %1 = vector.shape_cast %0 : vector<2x8x8xf32> to vector<2x64xf32>
    %c0_2 = arith.constant 0 : index
    %c0_3 = arith.constant 0 : index
    %2 = vector.load %arg2[%c0_2, %c0_3] : memref<32x2xf32, #tpu.memory_space<vmem>>, vector<32x1xf32>
    %3 = vector.extract_strided_slice %1 {offsets = [0, 0], sizes = [1, 64], strides = [1, 1]} : vector<2x64xf32> to vector<1x64xf32>
    %4 = vector.broadcast %2 : vector<32x1xf32> to vector<32x64xf32>
    %5 = vector.broadcast %3 : vector<1x64xf32> to vector<32x64xf32>
    %6 = arith.mulf %4, %5 : vector<32x64xf32>
    %c0_4 = arith.constant 0 : index
    %c1 = arith.constant 1 : index
    %7 = vector.load %arg2[%c0_4, %c1] : memref<32x2xf32, #tpu.memory_space<vmem>>, vector<32x1xf32>
    %8 = vector.extract_strided_slice %1 {offsets = [1, 0], sizes = [1, 64], strides = [1, 1]} : vector<2x64xf32> to vector<1x64xf32>
    %9 = vector.broadcast %7 : vector<32x1xf32> to vector<32x64xf32>
    %10 = vector.broadcast %8 : vector<1x64xf32> to vector<32x64xf32>
    %11 = arith.mulf %9, %10 : vector<32x64xf32>
    %12 = arith.addf %6, %11 : vector<32x64xf32>
    %c0_5 = arith.constant 0 : index
    %c0_6 = arith.constant 0 : index
    %13 = vector.load %arg3[%c0_5, %c0_6] : memref<32x1xf32, #tpu.memory_space<vmem>>, vector<32x1xf32>
    %14 = vector.broadcast %13 : vector<32x1xf32> to vector<32x64xf32>
    %15 = arith.addf %12, %14 : vector<32x64xf32>
    %cst = arith.constant 0.000000e+00 : f32
    %16 = vector.broadcast %cst : f32 to vector<32x64xf32>
    %17 = arith.maximumf %15, %16 : vector<32x64xf32>
    %c0_7 = arith.constant 0 : index
    %c0_8 = arith.constant 0 : index
    %18 = vector.load %arg4[%c0_7, %c0_8] : memref<64x32xf32, #tpu.memory_space<vmem>>, vector<64x32xf32>
    %cst_9 = arith.constant dense<0.000000e+00> : vector<64x64xf32>
    %19 = tpu.matmul %18, %17, %cst_9 {dimension_numbers = #tpu.dot_dimension_numbers<[1], [0], [0], [1], [0, 0, 1, 1], [], []>} : vector<64x32xf32>, vector<32x64xf32>, vector<64x64xf32> -> vector<64x64xf32>
    %c0_10 = arith.constant 0 : index
    %c0_11 = arith.constant 0 : index
    %20 = vector.load %arg5[%c0_10, %c0_11] : memref<64x1xf32, #tpu.memory_space<vmem>>, vector<64x1xf32>
    %21 = vector.broadcast %20 : vector<64x1xf32> to vector<64x64xf32>
    %22 = arith.addf %19, %21 : vector<64x64xf32>
    %cst_12 = arith.constant 0.000000e+00 : f32
    %23 = vector.broadcast %cst_12 : f32 to vector<64x64xf32>
    %24 = arith.maximumf %22, %23 : vector<64x64xf32>
    %c0_13 = arith.constant 0 : index
    %c0_14 = arith.constant 0 : index
    %25 = vector.load %arg6[%c0_13, %c0_14] : memref<32x64xf32, #tpu.memory_space<vmem>>, vector<32x64xf32>
    %cst_15 = arith.constant dense<0.000000e+00> : vector<32x64xf32>
    %26 = tpu.matmul %25, %24, %cst_15 {dimension_numbers = #tpu.dot_dimension_numbers<[1], [0], [0], [1], [0, 0, 1, 1], [], []>} : vector<32x64xf32>, vector<64x64xf32>, vector<32x64xf32> -> vector<32x64xf32>
    %c0_16 = arith.constant 0 : index
    %c0_17 = arith.constant 0 : index
    %27 = vector.load %arg7[%c0_16, %c0_17] : memref<32x1xf32, #tpu.memory_space<vmem>>, vector<32x1xf32>
    %28 = vector.broadcast %27 : vector<32x1xf32> to vector<32x64xf32>
    %29 = arith.addf %26, %28 : vector<32x64xf32>
    %30 = vector.extract_strided_slice %29 {offsets = [0, 0], sizes = [32, 8], strides = [1, 1]} : vector<32x64xf32> to vector<32x8xf32>
    %31 = vector.extract_strided_slice %29 {offsets = [0, 8], sizes = [32, 8], strides = [1, 1]} : vector<32x64xf32> to vector<32x8xf32>
    %32 = vector.extract_strided_slice %29 {offsets = [0, 16], sizes = [32, 8], strides = [1, 1]} : vector<32x64xf32> to vector<32x8xf32>
    %33 = vector.extract_strided_slice %29 {offsets = [0, 24], sizes = [32, 8], strides = [1, 1]} : vector<32x64xf32> to vector<32x8xf32>
    %34 = vector.extract_strided_slice %29 {offsets = [0, 32], sizes = [32, 8], strides = [1, 1]} : vector<32x64xf32> to vector<32x8xf32>
    %35 = vector.extract_strided_slice %29 {offsets = [0, 40], sizes = [32, 8], strides = [1, 1]} : vector<32x64xf32> to vector<32x8xf32>
    %36 = vector.extract_strided_slice %29 {offsets = [0, 48], sizes = [32, 8], strides = [1, 1]} : vector<32x64xf32> to vector<32x8xf32>
    %37 = vector.extract_strided_slice %29 {offsets = [0, 56], sizes = [32, 8], strides = [1, 1]} : vector<32x64xf32> to vector<32x8xf32>
    %38 = arith.mulf %30, %30 : vector<32x8xf32>
    %cst_18 = arith.constant dense<0.000000e+00> : vector<8xf32>
    %39 = vector.multi_reduction <add>, %38, %cst_18 [0] : vector<32x8xf32> to vector<8xf32>
    %40 = vector.shape_cast %39 : vector<8xf32> to vector<1x8xf32>
    %41 = arith.mulf %30, %31 : vector<32x8xf32>
    %cst_19 = arith.constant dense<0.000000e+00> : vector<8xf32>
    %42 = vector.multi_reduction <add>, %41, %cst_19 [0] : vector<32x8xf32> to vector<8xf32>
    %43 = vector.shape_cast %42 : vector<8xf32> to vector<1x8xf32>
    %44 = arith.mulf %30, %32 : vector<32x8xf32>
    %cst_20 = arith.constant dense<0.000000e+00> : vector<8xf32>
    %45 = vector.multi_reduction <add>, %44, %cst_20 [0] : vector<32x8xf32> to vector<8xf32>
    %46 = vector.shape_cast %45 : vector<8xf32> to vector<1x8xf32>
    %47 = arith.mulf %30, %33 : vector<32x8xf32>
    %cst_21 = arith.constant dense<0.000000e+00> : vector<8xf32>
    %48 = vector.multi_reduction <add>, %47, %cst_21 [0] : vector<32x8xf32> to vector<8xf32>
    %49 = vector.shape_cast %48 : vector<8xf32> to vector<1x8xf32>
    %50 = arith.mulf %30, %34 : vector<32x8xf32>
    %cst_22 = arith.constant dense<0.000000e+00> : vector<8xf32>
    %51 = vector.multi_reduction <add>, %50, %cst_22 [0] : vector<32x8xf32> to vector<8xf32>
    %52 = vector.shape_cast %51 : vector<8xf32> to vector<1x8xf32>
    %53 = arith.mulf %30, %35 : vector<32x8xf32>
    %cst_23 = arith.constant dense<0.000000e+00> : vector<8xf32>
    %54 = vector.multi_reduction <add>, %53, %cst_23 [0] : vector<32x8xf32> to vector<8xf32>
    %55 = vector.shape_cast %54 : vector<8xf32> to vector<1x8xf32>
    %56 = arith.mulf %30, %36 : vector<32x8xf32>
    %cst_24 = arith.constant dense<0.000000e+00> : vector<8xf32>
    %57 = vector.multi_reduction <add>, %56, %cst_24 [0] : vector<32x8xf32> to vector<8xf32>
    %58 = vector.shape_cast %57 : vector<8xf32> to vector<1x8xf32>
    %59 = arith.mulf %30, %37 : vector<32x8xf32>
    %cst_25 = arith.constant dense<0.000000e+00> : vector<8xf32>
    %60 = vector.multi_reduction <add>, %59, %cst_25 [0] : vector<32x8xf32> to vector<8xf32>
    %61 = vector.shape_cast %60 : vector<8xf32> to vector<1x8xf32>
    %62 = arith.mulf %31, %31 : vector<32x8xf32>
    %cst_26 = arith.constant dense<0.000000e+00> : vector<8xf32>
    %63 = vector.multi_reduction <add>, %62, %cst_26 [0] : vector<32x8xf32> to vector<8xf32>
    %64 = vector.shape_cast %63 : vector<8xf32> to vector<1x8xf32>
    %65 = arith.mulf %31, %32 : vector<32x8xf32>
    %cst_27 = arith.constant dense<0.000000e+00> : vector<8xf32>
    %66 = vector.multi_reduction <add>, %65, %cst_27 [0] : vector<32x8xf32> to vector<8xf32>
    %67 = vector.shape_cast %66 : vector<8xf32> to vector<1x8xf32>
    %68 = arith.mulf %31, %33 : vector<32x8xf32>
    %cst_28 = arith.constant dense<0.000000e+00> : vector<8xf32>
    %69 = vector.multi_reduction <add>, %68, %cst_28 [0] : vector<32x8xf32> to vector<8xf32>
    %70 = vector.shape_cast %69 : vector<8xf32> to vector<1x8xf32>
    %71 = arith.mulf %31, %34 : vector<32x8xf32>
    %cst_29 = arith.constant dense<0.000000e+00> : vector<8xf32>
    %72 = vector.multi_reduction <add>, %71, %cst_29 [0] : vector<32x8xf32> to vector<8xf32>
    %73 = vector.shape_cast %72 : vector<8xf32> to vector<1x8xf32>
    %74 = arith.mulf %31, %35 : vector<32x8xf32>
    %cst_30 = arith.constant dense<0.000000e+00> : vector<8xf32>
    %75 = vector.multi_reduction <add>, %74, %cst_30 [0] : vector<32x8xf32> to vector<8xf32>
    %76 = vector.shape_cast %75 : vector<8xf32> to vector<1x8xf32>
    %77 = arith.mulf %31, %36 : vector<32x8xf32>
    %cst_31 = arith.constant dense<0.000000e+00> : vector<8xf32>
    %78 = vector.multi_reduction <add>, %77, %cst_31 [0] : vector<32x8xf32> to vector<8xf32>
    %79 = vector.shape_cast %78 : vector<8xf32> to vector<1x8xf32>
    %80 = arith.mulf %31, %37 : vector<32x8xf32>
    %cst_32 = arith.constant dense<0.000000e+00> : vector<8xf32>
    %81 = vector.multi_reduction <add>, %80, %cst_32 [0] : vector<32x8xf32> to vector<8xf32>
    %82 = vector.shape_cast %81 : vector<8xf32> to vector<1x8xf32>
    %83 = arith.mulf %32, %32 : vector<32x8xf32>
    %cst_33 = arith.constant dense<0.000000e+00> : vector<8xf32>
    %84 = vector.multi_reduction <add>, %83, %cst_33 [0] : vector<32x8xf32> to vector<8xf32>
    %85 = vector.shape_cast %84 : vector<8xf32> to vector<1x8xf32>
    %86 = arith.mulf %32, %33 : vector<32x8xf32>
    %cst_34 = arith.constant dense<0.000000e+00> : vector<8xf32>
    %87 = vector.multi_reduction <add>, %86, %cst_34 [0] : vector<32x8xf32> to vector<8xf32>
    %88 = vector.shape_cast %87 : vector<8xf32> to vector<1x8xf32>
    %89 = arith.mulf %32, %34 : vector<32x8xf32>
    %cst_35 = arith.constant dense<0.000000e+00> : vector<8xf32>
    %90 = vector.multi_reduction <add>, %89, %cst_35 [0] : vector<32x8xf32> to vector<8xf32>
    %91 = vector.shape_cast %90 : vector<8xf32> to vector<1x8xf32>
    %92 = arith.mulf %32, %35 : vector<32x8xf32>
    %cst_36 = arith.constant dense<0.000000e+00> : vector<8xf32>
    %93 = vector.multi_reduction <add>, %92, %cst_36 [0] : vector<32x8xf32> to vector<8xf32>
    %94 = vector.shape_cast %93 : vector<8xf32> to vector<1x8xf32>
    %95 = arith.mulf %32, %36 : vector<32x8xf32>
    %cst_37 = arith.constant dense<0.000000e+00> : vector<8xf32>
    %96 = vector.multi_reduction <add>, %95, %cst_37 [0] : vector<32x8xf32> to vector<8xf32>
    %97 = vector.shape_cast %96 : vector<8xf32> to vector<1x8xf32>
    %98 = arith.mulf %32, %37 : vector<32x8xf32>
    %cst_38 = arith.constant dense<0.000000e+00> : vector<8xf32>
    %99 = vector.multi_reduction <add>, %98, %cst_38 [0] : vector<32x8xf32> to vector<8xf32>
    %100 = vector.shape_cast %99 : vector<8xf32> to vector<1x8xf32>
    %101 = arith.mulf %33, %33 : vector<32x8xf32>
    %cst_39 = arith.constant dense<0.000000e+00> : vector<8xf32>
    %102 = vector.multi_reduction <add>, %101, %cst_39 [0] : vector<32x8xf32> to vector<8xf32>
    %103 = vector.shape_cast %102 : vector<8xf32> to vector<1x8xf32>
    %104 = arith.mulf %33, %34 : vector<32x8xf32>
    %cst_40 = arith.constant dense<0.000000e+00> : vector<8xf32>
    %105 = vector.multi_reduction <add>, %104, %cst_40 [0] : vector<32x8xf32> to vector<8xf32>
    %106 = vector.shape_cast %105 : vector<8xf32> to vector<1x8xf32>
    %107 = arith.mulf %33, %35 : vector<32x8xf32>
    %cst_41 = arith.constant dense<0.000000e+00> : vector<8xf32>
    %108 = vector.multi_reduction <add>, %107, %cst_41 [0] : vector<32x8xf32> to vector<8xf32>
    %109 = vector.shape_cast %108 : vector<8xf32> to vector<1x8xf32>
    %110 = arith.mulf %33, %36 : vector<32x8xf32>
    %cst_42 = arith.constant dense<0.000000e+00> : vector<8xf32>
    %111 = vector.multi_reduction <add>, %110, %cst_42 [0] : vector<32x8xf32> to vector<8xf32>
    %112 = vector.shape_cast %111 : vector<8xf32> to vector<1x8xf32>
    %113 = arith.mulf %33, %37 : vector<32x8xf32>
    %cst_43 = arith.constant dense<0.000000e+00> : vector<8xf32>
    %114 = vector.multi_reduction <add>, %113, %cst_43 [0] : vector<32x8xf32> to vector<8xf32>
    %115 = vector.shape_cast %114 : vector<8xf32> to vector<1x8xf32>
    %116 = arith.mulf %34, %34 : vector<32x8xf32>
    %cst_44 = arith.constant dense<0.000000e+00> : vector<8xf32>
    %117 = vector.multi_reduction <add>, %116, %cst_44 [0] : vector<32x8xf32> to vector<8xf32>
    %118 = vector.shape_cast %117 : vector<8xf32> to vector<1x8xf32>
    %119 = arith.mulf %34, %35 : vector<32x8xf32>
    %cst_45 = arith.constant dense<0.000000e+00> : vector<8xf32>
    %120 = vector.multi_reduction <add>, %119, %cst_45 [0] : vector<32x8xf32> to vector<8xf32>
    %121 = vector.shape_cast %120 : vector<8xf32> to vector<1x8xf32>
    %122 = arith.mulf %34, %36 : vector<32x8xf32>
    %cst_46 = arith.constant dense<0.000000e+00> : vector<8xf32>
    %123 = vector.multi_reduction <add>, %122, %cst_46 [0] : vector<32x8xf32> to vector<8xf32>
    %124 = vector.shape_cast %123 : vector<8xf32> to vector<1x8xf32>
    %125 = arith.mulf %34, %37 : vector<32x8xf32>
    %cst_47 = arith.constant dense<0.000000e+00> : vector<8xf32>
    %126 = vector.multi_reduction <add>, %125, %cst_47 [0] : vector<32x8xf32> to vector<8xf32>
    %127 = vector.shape_cast %126 : vector<8xf32> to vector<1x8xf32>
    %128 = arith.mulf %35, %35 : vector<32x8xf32>
    %cst_48 = arith.constant dense<0.000000e+00> : vector<8xf32>
    %129 = vector.multi_reduction <add>, %128, %cst_48 [0] : vector<32x8xf32> to vector<8xf32>
    %130 = vector.shape_cast %129 : vector<8xf32> to vector<1x8xf32>
    %131 = arith.mulf %35, %36 : vector<32x8xf32>
    %cst_49 = arith.constant dense<0.000000e+00> : vector<8xf32>
    %132 = vector.multi_reduction <add>, %131, %cst_49 [0] : vector<32x8xf32> to vector<8xf32>
    %133 = vector.shape_cast %132 : vector<8xf32> to vector<1x8xf32>
    %134 = arith.mulf %35, %37 : vector<32x8xf32>
    %cst_50 = arith.constant dense<0.000000e+00> : vector<8xf32>
    %135 = vector.multi_reduction <add>, %134, %cst_50 [0] : vector<32x8xf32> to vector<8xf32>
    %136 = vector.shape_cast %135 : vector<8xf32> to vector<1x8xf32>
    %137 = arith.mulf %36, %36 : vector<32x8xf32>
    %cst_51 = arith.constant dense<0.000000e+00> : vector<8xf32>
    %138 = vector.multi_reduction <add>, %137, %cst_51 [0] : vector<32x8xf32> to vector<8xf32>
    %139 = vector.shape_cast %138 : vector<8xf32> to vector<1x8xf32>
    %140 = arith.mulf %36, %37 : vector<32x8xf32>
    %cst_52 = arith.constant dense<0.000000e+00> : vector<8xf32>
    %141 = vector.multi_reduction <add>, %140, %cst_52 [0] : vector<32x8xf32> to vector<8xf32>
    %142 = vector.shape_cast %141 : vector<8xf32> to vector<1x8xf32>
    %143 = arith.mulf %37, %37 : vector<32x8xf32>
    %cst_53 = arith.constant dense<0.000000e+00> : vector<8xf32>
    %144 = vector.multi_reduction <add>, %143, %cst_53 [0] : vector<32x8xf32> to vector<8xf32>
    %145 = vector.shape_cast %144 : vector<8xf32> to vector<1x8xf32>
    %146 = tpu.concatenate %40, %43, %46, %49, %52, %55, %58, %61 in 0 : vector<1x8xf32>, vector<1x8xf32>, vector<1x8xf32>, vector<1x8xf32>, vector<1x8xf32>, vector<1x8xf32>, vector<1x8xf32>, vector<1x8xf32> -> vector<8x8xf32>
    %147 = tpu.concatenate %43, %64, %67, %70, %73, %76, %79, %82 in 0 : vector<1x8xf32>, vector<1x8xf32>, vector<1x8xf32>, vector<1x8xf32>, vector<1x8xf32>, vector<1x8xf32>, vector<1x8xf32>, vector<1x8xf32> -> vector<8x8xf32>
    %148 = tpu.concatenate %46, %67, %85, %88, %91, %94, %97, %100 in 0 : vector<1x8xf32>, vector<1x8xf32>, vector<1x8xf32>, vector<1x8xf32>, vector<1x8xf32>, vector<1x8xf32>, vector<1x8xf32>, vector<1x8xf32> -> vector<8x8xf32>
    %149 = tpu.concatenate %49, %70, %88, %103, %106, %109, %112, %115 in 0 : vector<1x8xf32>, vector<1x8xf32>, vector<1x8xf32>, vector<1x8xf32>, vector<1x8xf32>, vector<1x8xf32>, vector<1x8xf32>, vector<1x8xf32> -> vector<8x8xf32>
    %150 = tpu.concatenate %52, %73, %91, %106, %118, %121, %124, %127 in 0 : vector<1x8xf32>, vector<1x8xf32>, vector<1x8xf32>, vector<1x8xf32>, vector<1x8xf32>, vector<1x8xf32>, vector<1x8xf32>, vector<1x8xf32> -> vector<8x8xf32>
    %151 = tpu.concatenate %55, %76, %94, %109, %121, %130, %133, %136 in 0 : vector<1x8xf32>, vector<1x8xf32>, vector<1x8xf32>, vector<1x8xf32>, vector<1x8xf32>, vector<1x8xf32>, vector<1x8xf32>, vector<1x8xf32> -> vector<8x8xf32>
    %152 = tpu.concatenate %58, %79, %97, %112, %124, %133, %139, %142 in 0 : vector<1x8xf32>, vector<1x8xf32>, vector<1x8xf32>, vector<1x8xf32>, vector<1x8xf32>, vector<1x8xf32>, vector<1x8xf32>, vector<1x8xf32> -> vector<8x8xf32>
    %153 = tpu.concatenate %61, %82, %100, %115, %127, %136, %142, %145 in 0 : vector<1x8xf32>, vector<1x8xf32>, vector<1x8xf32>, vector<1x8xf32>, vector<1x8xf32>, vector<1x8xf32>, vector<1x8xf32>, vector<1x8xf32> -> vector<8x8xf32>
    %154 = vector.shape_cast %146 : vector<8x8xf32> to vector<1x8x8xf32>
    %155 = vector.shape_cast %147 : vector<8x8xf32> to vector<1x8x8xf32>
    %156 = vector.shape_cast %148 : vector<8x8xf32> to vector<1x8x8xf32>
    %157 = vector.shape_cast %149 : vector<8x8xf32> to vector<1x8x8xf32>
    %158 = vector.shape_cast %150 : vector<8x8xf32> to vector<1x8x8xf32>
    %159 = vector.shape_cast %151 : vector<8x8xf32> to vector<1x8x8xf32>
    %160 = vector.shape_cast %152 : vector<8x8xf32> to vector<1x8x8xf32>
    %161 = vector.shape_cast %153 : vector<8x8xf32> to vector<1x8x8xf32>
    %162 = tpu.concatenate %154, %155, %156, %157, %158, %159, %160, %161 in 0 : vector<1x8x8xf32>, vector<1x8x8xf32>, vector<1x8x8xf32>, vector<1x8x8xf32>, vector<1x8x8xf32>, vector<1x8x8xf32>, vector<1x8x8xf32>, vector<1x8x8xf32> -> vector<8x8x8xf32>
    %cst_54 = arith.constant dense<0xFF800000> : vector<8x8xf32>
    %163 = vector.multi_reduction <maximumf>, %162, %cst_54 [1] : vector<8x8x8xf32> to vector<8x8xf32>
    %164 = vector.shape_cast %163 : vector<8x8xf32> to vector<8x1x8xf32>
    %165 = vector.broadcast %164 : vector<8x1x8xf32> to vector<8x8x8xf32>
    %166 = arith.subf %162, %165 : vector<8x8x8xf32>
    %167 = math.exp %166 : vector<8x8x8xf32>
    %cst_55 = arith.constant dense<0.000000e+00> : vector<8x8xf32>
    %168 = vector.multi_reduction <add>, %167, %cst_55 [1] : vector<8x8x8xf32> to vector<8x8xf32>
    %169 = vector.shape_cast %168 : vector<8x8xf32> to vector<8x1x8xf32>
    %170 = tpu.reciprocal %169 {approx = true} : vector<8x1x8xf32> -> vector<8x1x8xf32>
    %171 = arith.mulf %169, %170 : vector<8x1x8xf32>
    %cst_56 = arith.constant 2.000000e+00 : f32
    %172 = vector.broadcast %cst_56 : f32 to vector<8x1x8xf32>
    %173 = arith.subf %172, %171 : vector<8x1x8xf32>
    %174 = arith.mulf %170, %173 : vector<8x1x8xf32>
    %175 = vector.broadcast %174 : vector<8x1x8xf32> to vector<8x8x8xf32>
    %176 = arith.mulf %167, %175 : vector<8x8x8xf32>
    %c0_57 = arith.constant 0 : index
    %c0_58 = arith.constant 0 : index
    %c0_59 = arith.constant 0 : index
    %c0_60 = arith.constant 0 : index
    %177 = vector.load %arg8[%c0_57, %c0_58, %c0_59, %c0_60] : memref<1x8x8x8xf32, #tpu.memory_space<vmem>>, vector<1x8x8x8xf32>
    %178 = vector.shape_cast %177 : vector<1x8x8x8xf32> to vector<8x8x8xf32>
    %179 = vector.shape_cast %176 : vector<8x8x8xf32> to vector<1x8x8x8xf32>
    tpu.vector_store %arg8[%c0_57, %c0_58, %c0_59, %c0_60], %179 {strides = array<i32>} : memref<1x8x8x8xf32, #tpu.memory_space<vmem>>, vector<1x8x8x8xf32>,
    return
  }
  func.func @transform_0(%arg0: i32) -> (i32, i32, i32) {
    %c0_i32 = arith.constant 0 : i32
    %c0_i32_0 = arith.constant 0 : i32
    %c0_i32_1 = arith.constant 0 : i32
    return %c0_i32, %c0_i32_0, %arg0 : i32, i32, i32
  }
  func.func @transform_1(%arg0: i32) -> (i32, i32) {
    %c0_i32 = arith.constant 0 : i32
    %c0_i32_0 = arith.constant 0 : i32
    %c0_i32_1 = arith.constant 0 : i32
    return %c0_i32, %c0_i32_0 : i32, i32
  }
  func.func @transform_2(%arg0: i32) -> (i32, i32) {
    %c0_i32 = arith.constant 0 : i32
    %c0_i32_0 = arith.constant 0 : i32
    %c0_i32_1 = arith.constant 0 : i32
    return %c0_i32, %c0_i32_0 : i32, i32
  }
  func.func @transform_3(%arg0: i32) -> (i32, i32) {
    %c0_i32 = arith.constant 0 : i32
    %c0_i32_0 = arith.constant 0 : i32
    %c0_i32_1 = arith.constant 0 : i32
    return %c0_i32, %c0_i32_0 : i32, i32
  }
  func.func @transform_4(%arg0: i32) -> (i32, i32) {
    %c0_i32 = arith.constant 0 : i32
    %c0_i32_0 = arith.constant 0 : i32
    %c0_i32_1 = arith.constant 0 : i32
    return %c0_i32, %c0_i32_0 : i32, i32
  }
  func.func @transform_5(%arg0: i32) -> (i32, i32) {
    %c0_i32 = arith.constant 0 : i32
    %c0_i32_0 = arith.constant 0 : i32
    %c0_i32_1 = arith.constant 0 : i32
    return %c0_i32, %c0_i32_0 : i32, i32
  }
  func.func @transform_6(%arg0: i32) -> (i32, i32) {
    %c0_i32 = arith.constant 0 : i32
    %c0_i32_0 = arith.constant 0 : i32
    %c0_i32_1 = arith.constant 0 : i32
    return %c0_i32, %c0_i32_0 : i32, i32
  }
  func.func @transform_7(%arg0: i32) -> (i32, i32, i32, i32) {
    %c0_i32 = arith.constant 0 : i32
    %c0_i32_0 = arith.constant 0 : i32
    %c0_i32_1 = arith.constant 0 : i32
    %c0_i32_2 = arith.constant 0 : i32
    return %arg0, %c0_i32, %c0_i32_0, %c0_i32_1 : i32, i32, i32, i32
  }
}

</mosaic_0001>

<llo_original>
// kernel: tpu_custom_call.1
$region0: #{tpu_custom_call.1}
  #allocation0 [shape = 'u32[]', space=smem, size = 0x4, offset = 0x4, fixed_abs, tag = 'smem constant byte address 0x4 - core index']
  #allocation1 [shape = 'u32[144,128]{1,0:T(1,128)}', space=vmem, size = 0x12000, scoped, tag = 'internal scratch']
  %s0 = inlined_call_operand.vmem [shape: f32[2,8,8], index: 0, kind: input, shape index: {}]
  %s1 = inlined_call_operand.vmem [shape: f32[32,2], index: 1, kind: input, shape index: {}]
  %s2 = inlined_call_operand.vmem [shape: f32[32,1], index: 2, kind: input, shape index: {}]
  %s3 = inlined_call_operand.vmem [shape: f32[64,32], index: 3, kind: input, shape index: {}]
  %s4 = inlined_call_operand.vmem [shape: f32[64,1], index: 4, kind: input, shape index: {}]
  %s5 = inlined_call_operand.vmem [shape: f32[32,64], index: 5, kind: input, shape index: {}]
  %s6 = inlined_call_operand.vmem [shape: f32[32,1], index: 6, kind: input, shape index: {}]
  %s7 = inlined_call_operand.hbm [shape: f32[1,8,8,8], index: 7, kind: output, shape index: {}]
  %s8 = sld [smem:[#allocation0]]
  $region38: #{tpu_custom_call.1} parent=0
    _
  %s10 = ssub.s32 1, %s8
  %s11 = scalar_select 0, %s10, %s8
  $region1: #{tpu_custom_call.1} parent=0
    #allocation2 [shape = 'u8[32768]{0}', space=vmem, size = 0x8000, scoped, tag = 'output window, operand 0, single buffered']
    #allocation3 [shape = 's32[1]{0}', space=sflag, size = 0x4, scoped, tag = 'scoped memory for tpu_custom_call.1']
    %12 = vsyncpa [#allocation3], 0
    // Predicated region
    $region2: #{tpu_custom_call.1} parent=1 // pred_check
      _
    $region3: #{tpu_custom_call.1} parent=1 // pred_check_branch
      %14 = sbr.rel (0) target = $region5
    $region4: #{tpu_custom_call.1} parent=1 // pred_region
      _
    $region5: #{tpu_custom_call.1} parent=1 // pred_fallthru
      _
    // Predicated region
    $region6: #{tpu_custom_call.1} parent=1 // pred_check
      _
    $region7: #{tpu_custom_call.1} parent=1 // pred_check_branch
      %16 = sbr.rel (0) target = $region9
    $region8: #{tpu_custom_call.1} parent=1 // pred_region
      _
    $region9: #{tpu_custom_call.1} parent=1 // pred_fallthru
      _
    // Predicated region
    $region10: #{tpu_custom_call.1} parent=1 // pred_check
      _
    $region11: #{tpu_custom_call.1} parent=1 // pred_check_branch
      %18 = sbr.rel (0) target = $region13
    $region12: #{tpu_custom_call.1} parent=1 // pred_region
      _
    $region13: #{tpu_custom_call.1} parent=1 // pred_fallthru
      _
    // Predicated region
    $region14: #{tpu_custom_call.1} parent=1 // pred_check
      _
    $region15: #{tpu_custom_call.1} parent=1 // pred_check_branch
      %20 = sbr.rel (0) target = $region17
    $region16: #{tpu_custom_call.1} parent=1 // pred_region
      _
    $region17: #{tpu_custom_call.1} parent=1 // pred_fallthru
      _
    // Predicated region
    $region18: #{tpu_custom_call.1} parent=1 // pred_check
      _
    $region19: #{tpu_custom_call.1} parent=1 // pred_check_branch
      %22 = sbr.rel (0) target = $region21
    $region20: #{tpu_custom_call.1} parent=1 // pred_region
      _
    $region21: #{tpu_custom_call.1} parent=1 // pred_fallthru
      _
    // Predicated region
    $region22: #{tpu_custom_call.1} parent=1 // pred_check
      _
    $region23: #{tpu_custom_call.1} parent=1 // pred_check_branch
      %24 = sbr.rel (0) target = $region25
    $region24: #{tpu_custom_call.1} parent=1 // pred_region
      _
    $region25: #{tpu_custom_call.1} parent=1 // pred_fallthru
      _
    // Predicated region
    $region26: #{tpu_custom_call.1} parent=1 // pred_check
      _
    $region27: #{tpu_custom_call.1} parent=1 // pred_check_branch
      %26 = sbr.rel (0) target = $region29
    $region28: #{tpu_custom_call.1} parent=1 // pred_region
      _
    $region29: #{tpu_custom_call.1} parent=1 // pred_fallthru
      _
    %v27 = vld [vmem:[%s0] sm:$0xff]
    %v28 = vld [vmem:[%s0 + $0x8] sm:$0xff]
    %v29 = vcombine.high %v27, 0.0
    %v31 = vunpack.c.l.s4 1983009808
    %v32 = vunpack.c.0.s8 %v31
    %v33 = vlaneseq
    %v34 = vshrl.u32 %v33, 7
    %v35 = vsub.s32 %v32, %v34
    %v36 = vrot.slane %v27, %v35
    %v38 = vunpack.c.l.s4 1983009808
    %v39 = vunpack.c.0.s8 %v38
    %v40 = vlaneseq
    %v41 = vshrl.u32 %v40, 7
    %v42 = vsub.s32 %v39, %v41
    %v43 = vrot.slane %v29, %v42
    %v44 = vcombine.high %v28, 0.0
    %v46 = vunpack.c.l.s4 1983009808
    %v47 = vunpack.c.0.s8 %v46
    %v48 = vlaneseq
    %v49 = vshrl.u32 %v48, 7
    %v50 = vsub.s32 %v47, %v49
    %v51 = vrot.slane %v28, %v50
    %v53 = vunpack.c.l.s4 1983009808
    %v54 = vunpack.c.0.s8 %v53
    %v55 = vlaneseq
    %v56 = vshrl.u32 %v55, 7
    %v57 = vsub.s32 %v54, %v56
    %v58 = vrot.slane %v44, %v57
    %v59 = vcombine.low %v36, %v51
    %v60 = vcombine.high %v36, %v51
    %v62 = vunpack.c.l.s4 1934713408
    %v63 = vunpack.c.0.s8 %v62
    %v64 = vlaneseq
    %v65 = vshrl.u32 %v64, 7
    %v66 = vsub.s32 %v63, %v65
    %v67 = vrot.slane %v59, %v66
    %v69 = vunpack.c.l.s4 1934713408
    %v70 = vunpack.c.0.s8 %v69
    %v71 = vlaneseq
    %v72 = vshrl.u32 %v71, 7
    %v73 = vsub.s32 %v70, %v72
    %v74 = vrot.slane %v60, %v73
    %v75 = vcombine.low %v43, %v58
    %v76 = vcombine.high %v43, %v58
    %v78 = vunpack.c.l.s4 1934713408
    %v79 = vunpack.c.0.s8 %v78
    %v80 = vlaneseq
    %v81 = vshrl.u32 %v80, 7
    %v82 = vsub.s32 %v79, %v81
    %v83 = vrot.slane %v75, %v82
    %v85 = vunpack.c.l.s4 1934713408
    %v86 = vunpack.c.0.s8 %v85
    %v87 = vlaneseq
    %v88 = vshrl.u32 %v87, 7
    %v89 = vsub.s32 %v86, %v88
    %v90 = vrot.slane %v76, %v89
    %v91 = vcombine.high %v67, 0.0
    %v92 = vcombine.high %v74, 0.0
    %v93 = vcombine.high %v83, 0.0
    %v94 = vcombine.high %v90, 0.0
    %96 = vrot.lane.b32.xlu0 %v91, 8
    %v97 = vpop.permute.xlu0 %96
    %100 = vrot.lane.b32.xlu0 %v74, 16
    %v101 = vpop.permute.xlu0 %100
    %104 = vrot.lane.b32.xlu0 %v92, 24
    %v105 = vpop.permute.xlu0 %104
    %108 = vrot.lane.b32.xlu0 %v83, 32
    %v109 = vpop.permute.xlu0 %108
    %112 = vrot.lane.b32.xlu0 %v93, 40
    %v113 = vpop.permute.xlu0 %112
    %116 = vrot.lane.b32.xlu0 %v90, 48
    %v117 = vpop.permute.xlu0 %116
    %120 = vrot.lane.b32.xlu0 %v94, 56
    %v121 = vpop.permute.xlu0 %120
    %vm123 = vcmask 64512
    %v124 = vsel %vm123, %v67, %v97
    %vm125 = vcmask 130048
    %v126 = vsel %vm125, %v124, %v101
    %vm127 = vcmask 195584
    %v128 = vsel %vm127, %v126, %v105
    %vm129 = vcmask 261120
    %v130 = vsel %vm129, %v128, %v109
    %vm131 = vcmask 326656
    %v132 = vsel %vm131, %v130, %v113
    %vm133 = vcmask 392192
    %v134 = vsel %vm133, %v132, %v117
    %vm135 = vcmask 457728
    %v136 = vsel %vm135, %v134, %v121
    %v137 = vld [vmem:[%s1] sm:$0xff]
    %v138 = vld [vmem:[%s1 + $0x8] sm:$0xff]
    %v139 = vld [vmem:[%s1 + $0x10] sm:$0xff]
    %v140 = vld [vmem:[%s1 + $0x18] sm:$0xff]
    %142 = vset.pattern.permute.xlu0 0
    %143 = vperm.xlu0 %142, %v137
    %v144 = vpop.permute.xlu0 %143
    %147 = vset.pattern.permute.xlu0 0
    %148 = vperm.xlu0 %147, %v138
    %v149 = vpop.permute.xlu0 %148
    %152 = vset.pattern.permute.xlu0 0
    %153 = vperm.xlu0 %152, %v139
    %v154 = vpop.permute.xlu0 %153
    %157 = vset.pattern.permute.xlu0 0
    %158 = vperm.xlu0 %157, %v140
    %v159 = vpop.permute.xlu0 %158
    %v161 = vlaneseq
    %v162 = vshrl.u32 %v161, 7
    %v163 = vsub.s32 0, %v162
    %v164 = vrot.slane %v136, %v163
    %v165 = vmul.f32 %v144, %v164
    %v166 = vmul.f32 %v149, %v164
    %v167 = vmul.f32 %v154, %v164
    %v168 = vmul.f32 %v159, %v164
    %169 = vset.pattern.permute.xlu0 1
    %170 = vperm.xlu0 %169, %v137
    %v171 = vpop.permute.xlu0 %170
    %173 = vset.pattern.permute.xlu0 1
    %174 = vperm.xlu0 %173, %v138
    %v175 = vpop.permute.xlu0 %174
    %177 = vset.pattern.permute.xlu0 1
    %178 = vperm.xlu0 %177, %v139
    %v179 = vpop.permute.xlu0 %178
    %181 = vset.pattern.permute.xlu0 1
    %182 = vperm.xlu0 %181, %v140
    %v183 = vpop.permute.xlu0 %182
    %v185 = vlaneseq
    %v186 = vshrl.u32 %v185, 7
    %v187 = vsub.s32 1, %v186
    %v188 = vrot.slane %v136, %v187
    %v189 = vmul.f32 %v171, %v188
    %v190 = vmul.f32 %v175, %v188
    %v191 = vmul.f32 %v179, %v188
    %v192 = vmul.f32 %v183, %v188
    %v193 = vadd.f32 %v165, %v189
    %v194 = vadd.f32 %v166, %v190
    %v195 = vadd.f32 %v167, %v191
    %v196 = vadd.f32 %v168, %v192
    %v197 = vld [vmem:[%s2] sm:$0xff]
    %v198 = vld [vmem:[%s2 + $0x8] sm:$0xff]
    %v199 = vld [vmem:[%s2 + $0x10] sm:$0xff]
    %v200 = vld [vmem:[%s2 + $0x18] sm:$0xff]
    %202 = vset.pattern.permute.xlu0 0
    %203 = vperm.xlu0 %202, %v197
    %v204 = vpop.permute.xlu0 %203
    %207 = vset.pattern.permute.xlu0 0
    %208 = vperm.xlu0 %207, %v198
    %v209 = vpop.permute.xlu0 %208
    %212 = vset.pattern.permute.xlu0 0
    %213 = vperm.xlu0 %212, %v199
    %v214 = vpop.permute.xlu0 %213
    %217 = vset.pattern.permute.xlu0 0
    %218 = vperm.xlu0 %217, %v200
    %v219 = vpop.permute.xlu0 %218
    %v221 = vadd.f32 %v193, %v204
    %v222 = vadd.f32 %v194, %v209
    %v223 = vadd.f32 %v195, %v214
    %v224 = vadd.f32 %v196, %v219
    %v225 = vmax.f32 %v221, 0.0
    %v226 = vmax.f32 %v222, 0.0
    %v227 = vmax.f32 %v223, 0.0
    %v228 = vmax.f32 %v224, 0.0
    %v229 = vld [vmem:[%s3] sm:$0xff]
    %v230 = vld [vmem:[%s3 + $0x8] sm:$0xff]
    %v231 = vld [vmem:[%s3 + $0x10] sm:$0xff]
    %v232 = vld [vmem:[%s3 + $0x18] sm:$0xff]
    %v233 = vld [vmem:[%s3 + $0x20] sm:$0xff]
    %v234 = vld [vmem:[%s3 + $0x28] sm:$0xff]
    %v235 = vld [vmem:[%s3 + $0x30] sm:$0xff]
    %v236 = vld [vmem:[%s3 + $0x38] sm:$0xff]
    %v237 = vld [vmem:[%s4] sm:$0xff]
    %v238 = vld [vmem:[%s4 + $0x8] sm:$0xff]
    %v239 = vld [vmem:[%s4 + $0x10] sm:$0xff]
    %v240 = vld [vmem:[%s4 + $0x18] sm:$0xff]
    %v241 = vld [vmem:[%s4 + $0x20] sm:$0xff]
    %v242 = vld [vmem:[%s4 + $0x28] sm:$0xff]
    %v243 = vld [vmem:[%s4 + $0x30] sm:$0xff]
    %v244 = vld [vmem:[%s4 + $0x38] sm:$0xff]
    %246 = vset.pattern.permute.xlu0 0
    %247 = vperm.xlu0 %246, %v237
    %v248 = vpop.permute.xlu0 %247
    %251 = vset.pattern.permute.xlu0 0
    %252 = vperm.xlu0 %251, %v238
    %v253 = vpop.permute.xlu0 %252
    %256 = vset.pattern.permute.xlu0 0
    %257 = vperm.xlu0 %256, %v239
    %v258 = vpop.permute.xlu0 %257
    %261 = vset.pattern.permute.xlu0 0
    %262 = vperm.xlu0 %261, %v240
    %v263 = vpop.permute.xlu0 %262
    %266 = vset.pattern.permute.xlu0 0
    %267 = vperm.xlu0 %266, %v241
    %v268 = vpop.permute.xlu0 %267
    %271 = vset.pattern.permute.xlu0 0
    %272 = vperm.xlu0 %271, %v242
    %v273 = vpop.permute.xlu0 %272
    %276 = vset.pattern.permute.xlu0 0
    %277 = vperm.xlu0 %276, %v243
    %v278 = vpop.permute.xlu0 %277
    %281 = vset.pattern.permute.xlu0 0
    %282 = vperm.xlu0 %281, %v244
    %v283 = vpop.permute.xlu0 %282
    %v286 = vsel %vm129, %v229, 0
    %v289 = vsel %vm129, %v230, 0
    %v292 = vsel %vm129, %v231, 0
    %v295 = vsel %vm129, %v232, 0
    %v298 = vsel %vm129, %v233, 0
    %v301 = vsel %vm129, %v234, 0
    %v304 = vsel %vm129, %v235, 0
    %v307 = vsel %vm129, %v236, 0
    %309 = vmatprep.subr.mxu0 0.0
    %310 = vmatpush1.msra.mxu0 0.0
    %311 = vmatprep.subr.mxu0 0.0
    %312 = vmatpush1.msra.mxu0 0.0
    %313 = vmatprep.subr.mxu0 0.0
    %314 = vmatpush1.msra.mxu0 0.0
    %315 = vmatprep.subr.mxu0 0.0
    %316 = vmatpush1.msra.mxu0 0.0
    %317 = vmatprep.subr.mxu0 0.0
    %318 = vmatpush1.msra.mxu0 0.0
    %319 = vmatprep.subr.mxu0 0.0
    %320 = vmatpush1.msra.mxu0 0.0
    %321 = vmatprep.subr.mxu0 0.0
    %322 = vmatpush1.msra.mxu0 0.0
    %323 = vmatprep.subr.mxu0 0.0
    %324 = vmatpush1.msra.mxu0 0.0
    %325 = vmatprep.subr.mxu0 0.0
    %326 = vmatpush1.msra.mxu0 0.0
    %327 = vmatprep.subr.mxu0 0.0
    %328 = vmatpush1.msra.mxu0 0.0
    %329 = vmatprep.subr.mxu0 0.0
    %330 = vmatpush1.msra.mxu0 0.0
    %331 = vmatprep.subr.mxu0 0.0
    %332 = vmatpush1.msra.mxu0 0.0
    %333 = vmatprep.subr.mxu0 0.0
    %334 = vmatpush1.msra.mxu0 %v228
    %335 = vmatprep.subr.mxu0 0.0
    %336 = vmatpush1.msra.mxu0 %v227
    %337 = vmatprep.subr.mxu0 0.0
    %338 = vmatpush1.msra.mxu0 %v226
    %339 = vmatprep.subr.mxu0 0.0
    %340 = vmatpush1.msra.mxu0 %v225
    %341 = vmatprep.subr.mxu0 0.0
    %342 = vmatpush2.msra.mxu0 0.0
    %343 = vmatprep.subr.mxu0 0.0
    %344 = vmatpush2.msra.mxu0 0.0
    %345 = vmatprep.subr.mxu0 0.0
    %346 = vmatpush2.msra.mxu0 0.0
    %347 = vmatprep.subr.mxu0 0.0
    %348 = vmatpush2.msra.mxu0 0.0
    %349 = vmatprep.subr.mxu0 0.0
    %350 = vmatpush2.msra.mxu0 0.0
    %351 = vmatprep.subr.mxu0 0.0
    %352 = vmatpush2.msra.mxu0 0.0
    %353 = vmatprep.subr.mxu0 0.0
    %354 = vmatpush2.msra.mxu0 0.0
    %355 = vmatprep.subr.mxu0 0.0
    %356 = vmatpush2.msra.mxu0 0.0
    %357 = vmatprep.subr.mxu0 0.0
    %358 = vmatpush2.msra.mxu0 0.0
    %359 = vmatprep.subr.mxu0 0.0
    %360 = vmatpush2.msra.mxu0 0.0
    %361 = vmatprep.subr.mxu0 0.0
    %362 = vmatpush2.msra.mxu0 0.0
    %363 = vmatprep.subr.mxu0 0.0
    %364 = vmatpush2.msra.mxu0 0.0
    %365 = vmatprep.subr.mxu0 0.0
    %366 = vmatpush2.msra.mxu0 0.0
    %367 = vmatprep.subr.mxu0 0.0
    %368 = vmatpush2.msra.mxu0 0.0
    %369 = vmatprep.subr.mxu0 0.0
    %370 = vmatpush2.msra.mxu0 0.0
    %371 = vmatprep.subr.mxu0 0.0
    %372 = vmatpush2.msra.mxu0 0.0
    %373 = vmatprep.mubr.f32.mxu0 0.0
    %374 = vmatmul.mubr.f32.gmra.mxu0 %v286
    %v375 = vpop.f32.mrf.mxu0
    %v376 = vadd.f32 %v248, %v375
    %v377 = vpop.f32.mrf.mxu0
    %378 = vmatprep.mubr.f32.mxu0 0.0
    %379 = vmatmul.mubr.f32.gmra.mxu0 %v289
    %v380 = vpop.f32.mrf.mxu0
    %v381 = vadd.f32 %v253, %v380
    %v382 = vpop.f32.mrf.mxu0
    %383 = vmatprep.mubr.f32.mxu0 0.0
    %384 = vmatmul.mubr.f32.gmra.mxu0 %v292
    %v385 = vpop.f32.mrf.mxu0
    %v386 = vadd.f32 %v258, %v385
    %v387 = vpop.f32.mrf.mxu0
    %388 = vmatprep.mubr.f32.mxu0 0.0
    %389 = vmatmul.mubr.f32.gmra.mxu0 %v295
    %v390 = vpop.f32.mrf.mxu0
    %v391 = vadd.f32 %v263, %v390
    %v392 = vpop.f32.mrf.mxu0
    %393 = vmatprep.mubr.f32.mxu0 0.0
    %394 = vmatmul.mubr.f32.gmra.mxu0 %v298
    %v395 = vpop.f32.mrf.mxu0
    %v396 = vadd.f32 %v268, %v395
    %v397 = vpop.f32.mrf.mxu0
    %398 = vmatprep.mubr.f32.mxu0 0.0
    %399 = vmatmul.mubr.f32.gmra.mxu0 %v301
    %v400 = vpop.f32.mrf.mxu0
    %v401 = vadd.f32 %v273, %v400
    %v402 = vpop.f32.mrf.mxu0
    %403 = vmatprep.mubr.f32.mxu0 0.0
    %404 = vmatmul.mubr.f32.gmra.mxu0 %v304
    %v405 = vpop.f32.mrf.mxu0
    %v406 = vadd.f32 %v278, %v405
    %v407 = vpop.f32.mrf.mxu0
    %408 = vmatprep.mubr.f32.mxu0 0.0
    %409 = vmatmul.mubr.f32.gmra.mxu0 %v307
    %v410 = vpop.f32.mrf.mxu0
    %v411 = vadd.f32 %v283, %v410
    %v412 = vpop.f32.mrf.mxu0
    %413 = vdwg.mxu0
    %v414 = vmax.f32 %v376, 0.0
    %v415 = vmax.f32 %v381, 0.0
    %v416 = vmax.f32 %v386, 0.0
    %v417 = vmax.f32 %v391, 0.0
    %v418 = vmax.f32 %v396, 0.0
    %v419 = vmax.f32 %v401, 0.0
    %v420 = vmax.f32 %v406, 0.0
    %v421 = vmax.f32 %v411, 0.0
    %v422 = vld [vmem:[%s5] sm:$0xff]
    %v423 = vld [vmem:[%s5 + $0x8] sm:$0xff]
    %v424 = vld [vmem:[%s5 + $0x10] sm:$0xff]
    %v425 = vld [vmem:[%s5 + $0x18] sm:$0xff]
    %v426 = vld [vmem:[%s6] sm:$0xff]
    %v427 = vld [vmem:[%s6 + $0x8] sm:$0xff]
    %v428 = vld [vmem:[%s6 + $0x10] sm:$0xff]
    %v429 = vld [vmem:[%s6 + $0x18] sm:$0xff]
    %431 = vset.pattern.permute.xlu0 0
    %432 = vperm.xlu0 %431, %v426
    %v433 = vpop.permute.xlu0 %432
    %436 = vset.pattern.permute.xlu0 0
    %437 = vperm.xlu0 %436, %v427
    %v438 = vpop.permute.xlu0 %437
    %441 = vset.pattern.permute.xlu0 0
    %442 = vperm.xlu0 %441, %v428
    %v443 = vpop.permute.xlu0 %442
    %446 = vset.pattern.permute.xlu0 0
    %447 = vperm.xlu0 %446, %v429
    %v448 = vpop.permute.xlu0 %447
    %vm450 = vcmask 523264
    %v452 = vsel %vm450, %v422, 0
    %v455 = vsel %vm450, %v423, 0
    %v458 = vsel %vm450, %v424, 0
    %v461 = vsel %vm450, %v425, 0
    %463 = vmatprep.subr.mxu0 0.0
    %464 = vmatpush1.msra.mxu0 0.0
    %465 = vmatprep.subr.mxu0 0.0
    %466 = vmatpush1.msra.mxu0 0.0
    %467 = vmatprep.subr.mxu0 0.0
    %468 = vmatpush1.msra.mxu0 0.0
    %469 = vmatprep.subr.mxu0 0.0
    %470 = vmatpush1.msra.mxu0 0.0
    %471 = vmatprep.subr.mxu0 0.0
    %472 = vmatpush1.msra.mxu0 0.0
    %473 = vmatprep.subr.mxu0 0.0
    %474 = vmatpush1.msra.mxu0 0.0
    %475 = vmatprep.subr.mxu0 0.0
    %476 = vmatpush1.msra.mxu0 0.0
    %477 = vmatprep.subr.mxu0 0.0
    %478 = vmatpush1.msra.mxu0 0.0
    %479 = vmatprep.subr.mxu0 0.0
    %480 = vmatpush1.msra.mxu0 %v421
    %481 = vmatprep.subr.mxu0 0.0
    %482 = vmatpush1.msra.mxu0 %v420
    %483 = vmatprep.subr.mxu0 0.0
    %484 = vmatpush1.msra.mxu0 %v419
    %485 = vmatprep.subr.mxu0 0.0
    %486 = vmatpush1.msra.mxu0 %v418
    %487 = vmatprep.subr.mxu0 0.0
    %488 = vmatpush1.msra.mxu0 %v417
    %489 = vmatprep.subr.mxu0 0.0
    %490 = vmatpush1.msra.mxu0 %v416
    %491 = vmatprep.subr.mxu0 0.0
    %492 = vmatpush1.msra.mxu0 %v415
    %493 = vmatprep.subr.mxu0 0.0
    %494 = vmatpush1.msra.mxu0 %v414
    %495 = vmatprep.subr.mxu0 0.0
    %496 = vmatpush2.msra.mxu0 0.0
    %497 = vmatprep.subr.mxu0 0.0
    %498 = vmatpush2.msra.mxu0 0.0
    %499 = vmatprep.subr.mxu0 0.0
    %500 = vmatpush2.msra.mxu0 0.0
    %501 = vmatprep.subr.mxu0 0.0
    %502 = vmatpush2.msra.mxu0 0.0
    %503 = vmatprep.subr.mxu0 0.0
    %504 = vmatpush2.msra.mxu0 0.0
    %505 = vmatprep.subr.mxu0 0.0
    %506 = vmatpush2.msra.mxu0 0.0
    %507 = vmatprep.subr.mxu0 0.0
    %508 = vmatpush2.msra.mxu0 0.0
    %509 = vmatprep.subr.mxu0 0.0
    %510 = vmatpush2.msra.mxu0 0.0
    %511 = vmatprep.subr.mxu0 0.0
    %512 = vmatpush2.msra.mxu0 0.0
    %513 = vmatprep.subr.mxu0 0.0
    %514 = vmatpush2.msra.mxu0 0.0
    %515 = vmatprep.subr.mxu0 0.0
    %516 = vmatpush2.msra.mxu0 0.0
    %517 = vmatprep.subr.mxu0 0.0
    %518 = vmatpush2.msra.mxu0 0.0
    %519 = vmatprep.subr.mxu0 0.0
    %520 = vmatpush2.msra.mxu0 0.0
    %521 = vmatprep.subr.mxu0 0.0
    %522 = vmatpush2.msra.mxu0 0.0
    %523 = vmatprep.subr.mxu0 0.0
    %524 = vmatpush2.msra.mxu0 0.0
    %525 = vmatprep.subr.mxu0 0.0
    %526 = vmatpush2.msra.mxu0 0.0
    %527 = vmatprep.mubr.f32.mxu0 0.0
    %528 = vmatmul.mubr.f32.gmra.mxu0 %v452
    %v529 = vpop.f32.mrf.mxu0
    %v530 = vadd.f32 %v433, %v529
    %v531 = vpop.f32.mrf.mxu0
    %532 = vmatprep.mubr.f32.mxu0 0.0
    %533 = vmatmul.mubr.f32.gmra.mxu0 %v455
    %v534 = vpop.f32.mrf.mxu0
    %v535 = vadd.f32 %v438, %v534
    %v536 = vpop.f32.mrf.mxu0
    %537 = vmatprep.mubr.f32.mxu0 0.0
    %538 = vmatmul.mubr.f32.gmra.mxu0 %v458
    %v539 = vpop.f32.mrf.mxu0
    %v540 = vadd.f32 %v443, %v539
    %v541 = vpop.f32.mrf.mxu0
    %542 = vmatprep.mubr.f32.mxu0 0.0
    %543 = vmatmul.mubr.f32.gmra.mxu0 %v461
    %v544 = vpop.f32.mrf.mxu0
    %v545 = vadd.f32 %v448, %v544
    %v546 = vpop.f32.mrf.mxu0
    %547 = vdwg.mxu0
    %v548 = vmul.f32 %v530, %v530
    %v549 = vmul.f32 %v535, %v535
    %v550 = vmul.f32 %v540, %v540
    %v551 = vmul.f32 %v545, %v545
    %v552 = vsel %vm123, %v548, 0.0
    %v553 = vsel %vm123, %v549, 0.0
    %v554 = vadd.f32 %v552, %v553
    %v555 = vsel %vm123, %v550, 0.0
    %v556 = vadd.f32 %v554, %v555
    %v557 = vsel %vm123, %v551, 0.0
    %v558 = vadd.f32 %v556, %v557
    %v559 = vrot.slane %v558, 4
    %v560 = vadd.f32 %v558, %v559
    %v561 = vrot.slane %v560, 2
    %v562 = vadd.f32 %v560, %v561
    %v563 = vrot.slane %v562, 1
    %v564 = vadd.f32 %v562, %v563
    %569 = vrot.lane.b32.xlu0 %v530, 120
    %v570 = vpop.permute.xlu0 %569
    %571 = vrot.lane.b32.xlu0 %v535, 120
    %v572 = vpop.permute.xlu0 %571
    %573 = vrot.lane.b32.xlu0 %v540, 120
    %v574 = vpop.permute.xlu0 %573
    %575 = vrot.lane.b32.xlu0 %v545, 120
    %v576 = vpop.permute.xlu0 %575
    %v581 = vmul.f32 %v530, %v570
    %v582 = vmul.f32 %v535, %v572
    %v583 = vmul.f32 %v540, %v574
    %v584 = vmul.f32 %v545, %v576
    %v585 = vsel %vm123, %v581, 0.0
    %v586 = vsel %vm123, %v582, 0.0
    %v587 = vadd.f32 %v585, %v586
    %v588 = vsel %vm123, %v583, 0.0
    %v589 = vadd.f32 %v587, %v588
    %v590 = vsel %vm123, %v584, 0.0
    %v591 = vadd.f32 %v589, %v590
    %v592 = vrot.slane %v591, 4
    %v593 = vadd.f32 %v591, %v592
    %v594 = vrot.slane %v593, 2
    %v595 = vadd.f32 %v593, %v594
    %v596 = vrot.slane %v595, 1
    %v597 = vadd.f32 %v595, %v596
    %598 = vrot.lane.b32.xlu0 %v530, 112
    %v599 = vpop.permute.xlu0 %598
    %600 = vrot.lane.b32.xlu0 %v535, 112
    %v601 = vpop.permute.xlu0 %600
    %602 = vrot.lane.b32.xlu0 %v540, 112
    %v603 = vpop.permute.xlu0 %602
    %604 = vrot.lane.b32.xlu0 %v545, 112
    %v605 = vpop.permute.xlu0 %604
    %v610 = vmul.f32 %v530, %v599
    %v611 = vmul.f32 %v535, %v601
    %v612 = vmul.f32 %v540, %v603
    %v613 = vmul.f32 %v545, %v605
    %v614 = vsel %vm123, %v610, 0.0
    %v615 = vsel %vm123, %v611, 0.0
    %v616 = vadd.f32 %v614, %v615
    %v617 = vsel %vm123, %v612, 0.0
    %v618 = vadd.f32 %v616, %v617
    %v619 = vsel %vm123, %v613, 0.0
    %v620 = vadd.f32 %v618, %v619
    %v621 = vrot.slane %v620, 4
    %v622 = vadd.f32 %v620, %v621
    %v623 = vrot.slane %v622, 2
    %v624 = vadd.f32 %v622, %v623
    %v625 = vrot.slane %v624, 1
    %v626 = vadd.f32 %v624, %v625
    %627 = vrot.lane.b32.xlu0 %v530, 104
    %v628 = vpop.permute.xlu0 %627
    %629 = vrot.lane.b32.xlu0 %v535, 104
    %v630 = vpop.permute.xlu0 %629
    %631 = vrot.lane.b32.xlu0 %v540, 104
    %v632 = vpop.permute.xlu0 %631
    %633 = vrot.lane.b32.xlu0 %v545, 104
    %v634 = vpop.permute.xlu0 %633
    %v639 = vmul.f32 %v530, %v628
    %v640 = vmul.f32 %v535, %v630
    %v641 = vmul.f32 %v540, %v632
    %v642 = vmul.f32 %v545, %v634
    %v643 = vsel %vm123, %v639, 0.0
    %v644 = vsel %vm123, %v640, 0.0
    %v645 = vadd.f32 %v643, %v644
    %v646 = vsel %vm123, %v641, 0.0
    %v647 = vadd.f32 %v645, %v646
    %v648 = vsel %vm123, %v642, 0.0
    %v649 = vadd.f32 %v647, %v648
    %v650 = vrot.slane %v649, 4
    %v651 = vadd.f32 %v649, %v650
    %v652 = vrot.slane %v651, 2
    %v653 = vadd.f32 %v651, %v652
    %v654 = vrot.slane %v653, 1
    %v655 = vadd.f32 %v653, %v654
    %656 = vrot.lane.b32.xlu0 %v530, 96
    %v657 = vpop.permute.xlu0 %656
    %658 = vrot.lane.b32.xlu0 %v535, 96
    %v659 = vpop.permute.xlu0 %658
    %660 = vrot.lane.b32.xlu0 %v540, 96
    %v661 = vpop.permute.xlu0 %660
    %662 = vrot.lane.b32.xlu0 %v545, 96
    %v663 = vpop.permute.xlu0 %662
    %v668 = vmul.f32 %v530, %v657
    %v669 = vmul.f32 %v535, %v659
    %v670 = vmul.f32 %v540, %v661
    %v671 = vmul.f32 %v545, %v663
    %v672 = vsel %vm123, %v668, 0.0
    %v673 = vsel %vm123, %v669, 0.0
    %v674 = vadd.f32 %v672, %v673
    %v675 = vsel %vm123, %v670, 0.0
    %v676 = vadd.f32 %v674, %v675
    %v677 = vsel %vm123, %v671, 0.0
    %v678 = vadd.f32 %v676, %v677
    %v679 = vrot.slane %v678, 4
    %v680 = vadd.f32 %v678, %v679
    %v681 = vrot.slane %v680, 2
    %v682 = vadd.f32 %v680, %v681
    %v683 = vrot.slane %v682, 1
    %v684 = vadd.f32 %v682, %v683
    %685 = vrot.lane.b32.xlu0 %v530, 88
    %v686 = vpop.permute.xlu0 %685
    %687 = vrot.lane.b32.xlu0 %v535, 88
    %v688 = vpop.permute.xlu0 %687
    %689 = vrot.lane.b32.xlu0 %v540, 88
    %v690 = vpop.permute.xlu0 %689
    %691 = vrot.lane.b32.xlu0 %v545, 88
    %v692 = vpop.permute.xlu0 %691
    %v697 = vmul.f32 %v530, %v686
    %v698 = vmul.f32 %v535, %v688
    %v699 = vmul.f32 %v540, %v690
    %v700 = vmul.f32 %v545, %v692
    %v701 = vsel %vm123, %v697, 0.0
    %v702 = vsel %vm123, %v698, 0.0
    %v703 = vadd.f32 %v701, %v702
    %v704 = vsel %vm123, %v699, 0.0
    %v705 = vadd.f32 %v703, %v704
    %v706 = vsel %vm123, %v700, 0.0
    %v707 = vadd.f32 %v705, %v706
    %v708 = vrot.slane %v707, 4
    %v709 = vadd.f32 %v707, %v708
    %v710 = vrot.slane %v709, 2
    %v711 = vadd.f32 %v709, %v710
    %v712 = vrot.slane %v711, 1
    %v713 = vadd.f32 %v711, %v712
    %714 = vrot.lane.b32.xlu0 %v530, 80
    %v715 = vpop.permute.xlu0 %714
    %716 = vrot.lane.b32.xlu0 %v535, 80
    %v717 = vpop.permute.xlu0 %716
    %718 = vrot.lane.b32.xlu0 %v540, 80
    %v719 = vpop.permute.xlu0 %718
    %720 = vrot.lane.b32.xlu0 %v545, 80
    %v721 = vpop.permute.xlu0 %720
    %v726 = vmul.f32 %v530, %v715
    %v727 = vmul.f32 %v535, %v717
    %v728 = vmul.f32 %v540, %v719
    %v729 = vmul.f32 %v545, %v721
    %v730 = vsel %vm123, %v726, 0.0
    %v731 = vsel %vm123, %v727, 0.0
    %v732 = vadd.f32 %v730, %v731
    %v733 = vsel %vm123, %v728, 0.0
    %v734 = vadd.f32 %v732, %v733
    %v735 = vsel %vm123, %v729, 0.0
    %v736 = vadd.f32 %v734, %v735
    %v737 = vrot.slane %v736, 4
    %v738 = vadd.f32 %v736, %v737
    %v739 = vrot.slane %v738, 2
    %v740 = vadd.f32 %v738, %v739
    %v741 = vrot.slane %v740, 1
    %v742 = vadd.f32 %v740, %v741
    %743 = vrot.lane.b32.xlu0 %v530, 72
    %v744 = vpop.permute.xlu0 %743
    %745 = vrot.lane.b32.xlu0 %v535, 72
    %v746 = vpop.permute.xlu0 %745
    %747 = vrot.lane.b32.xlu0 %v540, 72
    %v748 = vpop.permute.xlu0 %747
    %749 = vrot.lane.b32.xlu0 %v545, 72
    %v750 = vpop.permute.xlu0 %749
    %v755 = vmul.f32 %v530, %v744
    %v756 = vmul.f32 %v535, %v746
    %v757 = vmul.f32 %v540, %v748
    %v758 = vmul.f32 %v545, %v750
    %v759 = vsel %vm123, %v755, 0.0
    %v760 = vsel %vm123, %v756, 0.0
    %v761 = vadd.f32 %v759, %v760
    %v762 = vsel %vm123, %v757, 0.0
    %v763 = vadd.f32 %v761, %v762
    %v764 = vsel %vm123, %v758, 0.0
    %v765 = vadd.f32 %v763, %v764
    %v766 = vrot.slane %v765, 4
    %v767 = vadd.f32 %v765, %v766
    %v768 = vrot.slane %v767, 2
    %v769 = vadd.f32 %v767, %v768
    %v770 = vrot.slane %v769, 1
    %v771 = vadd.f32 %v769, %v770
    %vm772 = vcmask 130112
    %v773 = vsel %vm772, %v548, 0.0
    %v774 = vsel %vm772, %v549, 0.0
    %v775 = vadd.f32 %v773, %v774
    %v776 = vsel %vm772, %v550, 0.0
    %v777 = vadd.f32 %v775, %v776
    %v778 = vsel %vm772, %v551, 0.0
    %v779 = vadd.f32 %v777, %v778
    %v780 = vrot.slane %v779, 4
    %v781 = vadd.f32 %v779, %v780
    %v782 = vrot.slane %v781, 2
    %v783 = vadd.f32 %v781, %v782
    %v784 = vrot.slane %v783, 1
    %v785 = vadd.f32 %v783, %v784
    %v786 = vsel %vm772, %v581, 0.0
    %v787 = vsel %vm772, %v582, 0.0
    %v788 = vadd.f32 %v786, %v787
    %v789 = vsel %vm772, %v583, 0.0
    %v790 = vadd.f32 %v788, %v789
    %v791 = vsel %vm772, %v584, 0.0
    %v792 = vadd.f32 %v790, %v791
    %v793 = vrot.slane %v792, 4
    %v794 = vadd.f32 %v792, %v793
    %v795 = vrot.slane %v794, 2
    %v796 = vadd.f32 %v794, %v795
    %v797 = vrot.slane %v796, 1
    %v798 = vadd.f32 %v796, %v797
    %v799 = vsel %vm772, %v610, 0.0
    %v800 = vsel %vm772, %v611, 0.0
    %v801 = vadd.f32 %v799, %v800
    %v802 = vsel %vm772, %v612, 0.0
    %v803 = vadd.f32 %v801, %v802
    %v804 = vsel %vm772, %v613, 0.0
    %v805 = vadd.f32 %v803, %v804
    %v806 = vrot.slane %v805, 4
    %v807 = vadd.f32 %v805, %v806
    %v808 = vrot.slane %v807, 2
    %v809 = vadd.f32 %v807, %v808
    %v810 = vrot.slane %v809, 1
    %v811 = vadd.f32 %v809, %v810
    %v812 = vsel %vm772, %v639, 0.0
    %v813 = vsel %vm772, %v640, 0.0
    %v814 = vadd.f32 %v812, %v813
    %v815 = vsel %vm772, %v641, 0.0
    %v816 = vadd.f32 %v814, %v815
    %v817 = vsel %vm772, %v642, 0.0
    %v818 = vadd.f32 %v816, %v817
    %v819 = vrot.slane %v818, 4
    %v820 = vadd.f32 %v818, %v819
    %v821 = vrot.slane %v820, 2
    %v822 = vadd.f32 %v820, %v821
    %v823 = vrot.slane %v822, 1
    %v824 = vadd.f32 %v822, %v823
    %v825 = vsel %vm772, %v668, 0.0
    %v826 = vsel %vm772, %v669, 0.0
    %v827 = vadd.f32 %v825, %v826
    %v828 = vsel %vm772, %v670, 0.0
    %v829 = vadd.f32 %v827, %v828
    %v830 = vsel %vm772, %v671, 0.0
    %v831 = vadd.f32 %v829, %v830
    %v832 = vrot.slane %v831, 4
    %v833 = vadd.f32 %v831, %v832
    %v834 = vrot.slane %v833, 2
    %v835 = vadd.f32 %v833, %v834
    %v836 = vrot.slane %v835, 1
    %v837 = vadd.f32 %v835, %v836
    %v838 = vsel %vm772, %v697, 0.0
    %v839 = vsel %vm772, %v698, 0.0
    %v840 = vadd.f32 %v838, %v839
    %v841 = vsel %vm772, %v699, 0.0
    %v842 = vadd.f32 %v840, %v841
    %v843 = vsel %vm772, %v700, 0.0
    %v844 = vadd.f32 %v842, %v843
    %v845 = vrot.slane %v844, 4
    %v846 = vadd.f32 %v844, %v845
    %v847 = vrot.slane %v846, 2
    %v848 = vadd.f32 %v846, %v847
    %v849 = vrot.slane %v848, 1
    %v850 = vadd.f32 %v848, %v849
    %v851 = vsel %vm772, %v726, 0.0
    %v852 = vsel %vm772, %v727, 0.0
    %v853 = vadd.f32 %v851, %v852
    %v854 = vsel %vm772, %v728, 0.0
    %v855 = vadd.f32 %v853, %v854
    %v856 = vsel %vm772, %v729, 0.0
    %v857 = vadd.f32 %v855, %v856
    %v858 = vrot.slane %v857, 4
    %v859 = vadd.f32 %v857, %v858
    %v860 = vrot.slane %v859, 2
    %v861 = vadd.f32 %v859, %v860
    %v862 = vrot.slane %v861, 1
    %v863 = vadd.f32 %v861, %v862
    %vm864 = vcmask 195712
    %v865 = vsel %vm864, %v548, 0.0
    %v866 = vsel %vm864, %v549, 0.0
    %v867 = vadd.f32 %v865, %v866
    %v868 = vsel %vm864, %v550, 0.0
    %v869 = vadd.f32 %v867, %v868
    %v870 = vsel %vm864, %v551, 0.0
    %v871 = vadd.f32 %v869, %v870
    %v872 = vrot.slane %v871, 4
    %v873 = vadd.f32 %v871, %v872
    %v874 = vrot.slane %v873, 2
    %v875 = vadd.f32 %v873, %v874
    %v876 = vrot.slane %v875, 1
    %v877 = vadd.f32 %v875, %v876
    %v878 = vsel %vm864, %v581, 0.0
    %v879 = vsel %vm864, %v582, 0.0
    %v880 = vadd.f32 %v878, %v879
    %v881 = vsel %vm864, %v583, 0.0
    %v882 = vadd.f32 %v880, %v881
    %v883 = vsel %vm864, %v584, 0.0
    %v884 = vadd.f32 %v882, %v883
    %v885 = vrot.slane %v884, 4
    %v886 = vadd.f32 %v884, %v885
    %v887 = vrot.slane %v886, 2
    %v888 = vadd.f32 %v886, %v887
    %v889 = vrot.slane %v888, 1
    %v890 = vadd.f32 %v888, %v889
    %v891 = vsel %vm864, %v610, 0.0
    %v892 = vsel %vm864, %v611, 0.0
    %v893 = vadd.f32 %v891, %v892
    %v894 = vsel %vm864, %v612, 0.0
    %v895 = vadd.f32 %v893, %v894
    %v896 = vsel %vm864, %v613, 0.0
    %v897 = vadd.f32 %v895, %v896
    %v898 = vrot.slane %v897, 4
    %v899 = vadd.f32 %v897, %v898
    %v900 = vrot.slane %v899, 2
    %v901 = vadd.f32 %v899, %v900
    %v902 = vrot.slane %v901, 1
    %v903 = vadd.f32 %v901, %v902
    %v904 = vsel %vm864, %v639, 0.0
    %v905 = vsel %vm864, %v640, 0.0
    %v906 = vadd.f32 %v904, %v905
    %v907 = vsel %vm864, %v641, 0.0
    %v908 = vadd.f32 %v906, %v907
    %v909 = vsel %vm864, %v642, 0.0
    %v910 = vadd.f32 %v908, %v909
    %v911 = vrot.slane %v910, 4
    %v912 = vadd.f32 %v910, %v911
    %v913 = vrot.slane %v912, 2
    %v914 = vadd.f32 %v912, %v913
    %v915 = vrot.slane %v914, 1
    %v916 = vadd.f32 %v914, %v915
    %v917 = vsel %vm864, %v668, 0.0
    %v918 = vsel %vm864, %v669, 0.0
    %v919 = vadd.f32 %v917, %v918
    %v920 = vsel %vm864, %v670, 0.0
    %v921 = vadd.f32 %v919, %v920
    %v922 = vsel %vm864, %v671, 0.0
    %v923 = vadd.f32 %v921, %v922
    %v924 = vrot.slane %v923, 4
    %v925 = vadd.f32 %v923, %v924
    %v926 = vrot.slane %v925, 2
    %v927 = vadd.f32 %v925, %v926
    %v928 = vrot.slane %v927, 1
    %v929 = vadd.f32 %v927, %v928
    %v930 = vsel %vm864, %v697, 0.0
    %v931 = vsel %vm864, %v698, 0.0
    %v932 = vadd.f32 %v930, %v931
    %v933 = vsel %vm864, %v699, 0.0
    %v934 = vadd.f32 %v932, %v933
    %v935 = vsel %vm864, %v700, 0.0
    %v936 = vadd.f32 %v934, %v935
    %v937 = vrot.slane %v936, 4
    %v938 = vadd.f32 %v936, %v937
    %v939 = vrot.slane %v938, 2
    %v940 = vadd.f32 %v938, %v939
    %v941 = vrot.slane %v940, 1
    %v942 = vadd.f32 %v940, %v941
    %vm943 = vcmask 261312
    %v944 = vsel %vm943, %v548, 0.0
    %v945 = vsel %vm943, %v549, 0.0
    %v946 = vadd.f32 %v944, %v945
    %v947 = vsel %vm943, %v550, 0.0
    %v948 = vadd.f32 %v946, %v947
    %v949 = vsel %vm943, %v551, 0.0
    %v950 = vadd.f32 %v948, %v949
    %v951 = vrot.slane %v950, 4
    %v952 = vadd.f32 %v950, %v951
    %v953 = vrot.slane %v952, 2
    %v954 = vadd.f32 %v952, %v953
    %v955 = vrot.slane %v954, 1
    %v956 = vadd.f32 %v954, %v955
    %v957 = vsel %vm943, %v581, 0.0
    %v958 = vsel %vm943, %v582, 0.0
    %v959 = vadd.f32 %v957, %v958
    %v960 = vsel %vm943, %v583, 0.0
    %v961 = vadd.f32 %v959, %v960
    %v962 = vsel %vm943, %v584, 0.0
    %v963 = vadd.f32 %v961, %v962
    %v964 = vrot.slane %v963, 4
    %v965 = vadd.f32 %v963, %v964
    %v966 = vrot.slane %v965, 2
    %v967 = vadd.f32 %v965, %v966
    %v968 = vrot.slane %v967, 1
    %v969 = vadd.f32 %v967, %v968
    %v970 = vsel %vm943, %v610, 0.0
    %v971 = vsel %vm943, %v611, 0.0
    %v972 = vadd.f32 %v970, %v971
    %v973 = vsel %vm943, %v612, 0.0
    %v974 = vadd.f32 %v972, %v973
    %v975 = vsel %vm943, %v613, 0.0
    %v976 = vadd.f32 %v974, %v975
    %v977 = vrot.slane %v976, 4
    %v978 = vadd.f32 %v976, %v977
    %v979 = vrot.slane %v978, 2
    %v980 = vadd.f32 %v978, %v979
    %v981 = vrot.slane %v980, 1
    %v982 = vadd.f32 %v980, %v981
    %v983 = vsel %vm943, %v639, 0.0
    %v984 = vsel %vm943, %v640, 0.0
    %v985 = vadd.f32 %v983, %v984
    %v986 = vsel %vm943, %v641, 0.0
    %v987 = vadd.f32 %v985, %v986
    %v988 = vsel %vm943, %v642, 0.0
    %v989 = vadd.f32 %v987, %v988
    %v990 = vrot.slane %v989, 4
    %v991 = vadd.f32 %v989, %v990
    %v992 = vrot.slane %v991, 2
    %v993 = vadd.f32 %v991, %v992
    %v994 = vrot.slane %v993, 1
    %v995 = vadd.f32 %v993, %v994
    %v996 = vsel %vm943, %v668, 0.0
    %v997 = vsel %vm943, %v669, 0.0
    %v998 = vadd.f32 %v996, %v997
    %v999 = vsel %vm943, %v670, 0.0
    %v1000 = vadd.f32 %v998, %v999
    %v1001 = vsel %vm943, %v671, 0.0
    %v1002 = vadd.f32 %v1000, %v1001
    %v1003 = vrot.slane %v1002, 4
    %v1004 = vadd.f32 %v1002, %v1003
    %v1005 = vrot.slane %v1004, 2
    %v1006 = vadd.f32 %v1004, %v1005
    %v1007 = vrot.slane %v1006, 1
    %v1008 = vadd.f32 %v1006, %v1007
    %vm1009 = vcmask 326912
    %v1010 = vsel %vm1009, %v548, 0.0
    %v1011 = vsel %vm1009, %v549, 0.0
    %v1012 = vadd.f32 %v1010, %v1011
    %v1013 = vsel %vm1009, %v550, 0.0
    %v1014 = vadd.f32 %v1012, %v1013
    %v1015 = vsel %vm1009, %v551, 0.0
    %v1016 = vadd.f32 %v1014, %v1015
    %v1017 = vrot.slane %v1016, 4
    %v1018 = vadd.f32 %v1016, %v1017
    %v1019 = vrot.slane %v1018, 2
    %v1020 = vadd.f32 %v1018, %v1019
    %v1021 = vrot.slane %v1020, 1
    %v1022 = vadd.f32 %v1020, %v1021
    %v1023 = vsel %vm1009, %v581, 0.0
    %v1024 = vsel %vm1009, %v582, 0.0
    %v1025 = vadd.f32 %v1023, %v1024
    %v1026 = vsel %vm1009, %v583, 0.0
    %v1027 = vadd.f32 %v1025, %v1026
    %v1028 = vsel %vm1009, %v584, 0.0
    %v1029 = vadd.f32 %v1027, %v1028
    %v1030 = vrot.slane %v1029, 4
    %v1031 = vadd.f32 %v1029, %v1030
    %v1032 = vrot.slane %v1031, 2
    %v1033 = vadd.f32 %v1031, %v1032
    %v1034 = vrot.slane %v1033, 1
    %v1035 = vadd.f32 %v1033, %v1034
    %v1036 = vsel %vm1009, %v610, 0.0
    %v1037 = vsel %vm1009, %v611, 0.0
    %v1038 = vadd.f32 %v1036, %v1037
    %v1039 = vsel %vm1009, %v612, 0.0
    %v1040 = vadd.f32 %v1038, %v1039
    %v1041 = vsel %vm1009, %v613, 0.0
    %v1042 = vadd.f32 %v1040, %v1041
    %v1043 = vrot.slane %v1042, 4
    %v1044 = vadd.f32 %v1042, %v1043
    %v1045 = vrot.slane %v1044, 2
    %v1046 = vadd.f32 %v1044, %v1045
    %v1047 = vrot.slane %v1046, 1
    %v1048 = vadd.f32 %v1046, %v1047
    %v1049 = vsel %vm1009, %v639, 0.0
    %v1050 = vsel %vm1009, %v640, 0.0
    %v1051 = vadd.f32 %v1049, %v1050
    %v1052 = vsel %vm1009, %v641, 0.0
    %v1053 = vadd.f32 %v1051, %v1052
    %v1054 = vsel %vm1009, %v642, 0.0
    %v1055 = vadd.f32 %v1053, %v1054
    %v1056 = vrot.slane %v1055, 4
    %v1057 = vadd.f32 %v1055, %v1056
    %v1058 = vrot.slane %v1057, 2
    %v1059 = vadd.f32 %v1057, %v1058
    %v1060 = vrot.slane %v1059, 1
    %v1061 = vadd.f32 %v1059, %v1060
    %vm1062 = vcmask 392512
    %v1063 = vsel %vm1062, %v548, 0.0
    %v1064 = vsel %vm1062, %v549, 0.0
    %v1065 = vadd.f32 %v1063, %v1064
    %v1066 = vsel %vm1062, %v550, 0.0
    %v1067 = vadd.f32 %v1065, %v1066
    %v1068 = vsel %vm1062, %v551, 0.0
    %v1069 = vadd.f32 %v1067, %v1068
    %v1070 = vrot.slane %v1069, 4
    %v1071 = vadd.f32 %v1069, %v1070
    %v1072 = vrot.slane %v1071, 2
    %v1073 = vadd.f32 %v1071, %v1072
    %v1074 = vrot.slane %v1073, 1
    %v1075 = vadd.f32 %v1073, %v1074
    %v1076 = vsel %vm1062, %v581, 0.0
    %v1077 = vsel %vm1062, %v582, 0.0
    %v1078 = vadd.f32 %v1076, %v1077
    %v1079 = vsel %vm1062, %v583, 0.0
    %v1080 = vadd.f32 %v1078, %v1079
    %v1081 = vsel %vm1062, %v584, 0.0
    %v1082 = vadd.f32 %v1080, %v1081
    %v1083 = vrot.slane %v1082, 4
    %v1084 = vadd.f32 %v1082, %v1083
    %v1085 = vrot.slane %v1084, 2
    %v1086 = vadd.f32 %v1084, %v1085
    %v1087 = vrot.slane %v1086, 1
    %v1088 = vadd.f32 %v1086, %v1087
    %v1089 = vsel %vm1062, %v610, 0.0
    %v1090 = vsel %vm1062, %v611, 0.0
    %v1091 = vadd.f32 %v1089, %v1090
    %v1092 = vsel %vm1062, %v612, 0.0
    %v1093 = vadd.f32 %v1091, %v1092
    %v1094 = vsel %vm1062, %v613, 0.0
    %v1095 = vadd.f32 %v1093, %v1094
    %v1096 = vrot.slane %v1095, 4
    %v1097 = vadd.f32 %v1095, %v1096
    %v1098 = vrot.slane %v1097, 2
    %v1099 = vadd.f32 %v1097, %v1098
    %v1100 = vrot.slane %v1099, 1
    %v1101 = vadd.f32 %v1099, %v1100
    %vm1102 = vcmask 458112
    %v1103 = vsel %vm1102, %v548, 0.0
    %v1104 = vsel %vm1102, %v549, 0.0
    %v1105 = vadd.f32 %v1103, %v1104
    %v1106 = vsel %vm1102, %v550, 0.0
    %v1107 = vadd.f32 %v1105, %v1106
    %v1108 = vsel %vm1102, %v551, 0.0
    %v1109 = vadd.f32 %v1107, %v1108
    %v1110 = vrot.slane %v1109, 4
    %v1111 = vadd.f32 %v1109, %v1110
    %v1112 = vrot.slane %v1111, 2
    %v1113 = vadd.f32 %v1111, %v1112
    %v1114 = vrot.slane %v1113, 1
    %v1115 = vadd.f32 %v1113, %v1114
    %v1116 = vsel %vm1102, %v581, 0.0
    %v1117 = vsel %vm1102, %v582, 0.0
    %v1118 = vadd.f32 %v1116, %v1117
    %v1119 = vsel %vm1102, %v583, 0.0
    %v1120 = vadd.f32 %v1118, %v1119
    %v1121 = vsel %vm1102, %v584, 0.0
    %v1122 = vadd.f32 %v1120, %v1121
    %v1123 = vrot.slane %v1122, 4
    %v1124 = vadd.f32 %v1122, %v1123
    %v1125 = vrot.slane %v1124, 2
    %v1126 = vadd.f32 %v1124, %v1125
    %v1127 = vrot.slane %v1126, 1
    %v1128 = vadd.f32 %v1126, %v1127
    %vm1129 = vcmask 523712
    %v1130 = vsel %vm1129, %v548, 0.0
    %v1131 = vsel %vm1129, %v549, 0.0
    %v1132 = vadd.f32 %v1130, %v1131
    %v1133 = vsel %vm1129, %v550, 0.0
    %v1134 = vadd.f32 %v1132, %v1133
    %v1135 = vsel %vm1129, %v551, 0.0
    %v1136 = vadd.f32 %v1134, %v1135
    %v1137 = vrot.slane %v1136, 4
    %v1138 = vadd.f32 %v1136, %v1137
    %v1139 = vrot.slane %v1138, 2
    %v1140 = vadd.f32 %v1138, %v1139
    %v1141 = vrot.slane %v1140, 1
    %v1142 = vadd.f32 %v1140, %v1141
    %vm1143 = vcmask 1040384
    %v1144 = vsel %vm1143, %v564, %v597
    %vm1145 = vcmask 1041408
    %v1146 = vsel %vm1145, %v1144, %v626
    %vm1147 = vcmask 1042432
    %v1148 = vsel %vm1147, %v1146, %v655
    %vm1149 = vcmask 1043456
    %v1150 = vsel %vm1149, %v1148, %v684
    %vm1151 = vcmask 1044480
    %v1152 = vsel %vm1151, %v1150, %v713
    %vm1153 = vcmask 1045504
    %v1154 = vsel %vm1153, %v1152, %v742
    %vm1155 = vcmask 1046528
    %v1156 = vsel %vm1155, %v1154, %v771
    %1158 = vrot.lane.b32.xlu0 %v785, 120
    %v1159 = vpop.permute.xlu0 %1158
    %1162 = vrot.lane.b32.xlu0 %v798, 120
    %v1163 = vpop.permute.xlu0 %1162
    %1166 = vrot.lane.b32.xlu0 %v811, 120
    %v1167 = vpop.permute.xlu0 %1166
    %1170 = vrot.lane.b32.xlu0 %v824, 120
    %v1171 = vpop.permute.xlu0 %1170
    %1174 = vrot.lane.b32.xlu0 %v837, 120
    %v1175 = vpop.permute.xlu0 %1174
    %1178 = vrot.lane.b32.xlu0 %v850, 120
    %v1179 = vpop.permute.xlu0 %1178
    %1182 = vrot.lane.b32.xlu0 %v863, 120
    %v1183 = vpop.permute.xlu0 %1182
    %v1185 = vsel %vm1143, %v597, %v1159
    %v1186 = vsel %vm1145, %v1185, %v1163
    %v1187 = vsel %vm1147, %v1186, %v1167
    %v1188 = vsel %vm1149, %v1187, %v1171
    %v1189 = vsel %vm1151, %v1188, %v1175
    %v1190 = vsel %vm1153, %v1189, %v1179
    %v1191 = vsel %vm1155, %v1190, %v1183
    %1193 = vrot.lane.b32.xlu0 %v877, 112
    %v1194 = vpop.permute.xlu0 %1193
    %1197 = vrot.lane.b32.xlu0 %v890, 112
    %v1198 = vpop.permute.xlu0 %1197
    %1201 = vrot.lane.b32.xlu0 %v903, 112
    %v1202 = vpop.permute.xlu0 %1201
    %1205 = vrot.lane.b32.xlu0 %v916, 112
    %v1206 = vpop.permute.xlu0 %1205
    %1209 = vrot.lane.b32.xlu0 %v929, 112
    %v1210 = vpop.permute.xlu0 %1209
    %1213 = vrot.lane.b32.xlu0 %v942, 112
    %v1214 = vpop.permute.xlu0 %1213
    %v1216 = vsel %vm1143, %v626, %v1163
    %v1217 = vsel %vm1145, %v1216, %v1194
    %v1218 = vsel %vm1147, %v1217, %v1198
    %v1219 = vsel %vm1149, %v1218, %v1202
    %v1220 = vsel %vm1151, %v1219, %v1206
    %v1221 = vsel %vm1153, %v1220, %v1210
    %v1222 = vsel %vm1155, %v1221, %v1214
    %1224 = vrot.lane.b32.xlu0 %v956, 104
    %v1225 = vpop.permute.xlu0 %1224
    %1228 = vrot.lane.b32.xlu0 %v969, 104
    %v1229 = vpop.permute.xlu0 %1228
    %1232 = vrot.lane.b32.xlu0 %v982, 104
    %v1233 = vpop.permute.xlu0 %1232
    %1236 = vrot.lane.b32.xlu0 %v995, 104
    %v1237 = vpop.permute.xlu0 %1236
    %1240 = vrot.lane.b32.xlu0 %v1008, 104
    %v1241 = vpop.permute.xlu0 %1240
    %v1243 = vsel %vm1143, %v655, %v1167
    %v1244 = vsel %vm1145, %v1243, %v1198
    %v1245 = vsel %vm1147, %v1244, %v1225
    %v1246 = vsel %vm1149, %v1245, %v1229
    %v1247 = vsel %vm1151, %v1246, %v1233
    %v1248 = vsel %vm1153, %v1247, %v1237
    %v1249 = vsel %vm1155, %v1248, %v1241
    %1251 = vrot.lane.b32.xlu0 %v1022, 96
    %v1252 = vpop.permute.xlu0 %1251
    %1255 = vrot.lane.b32.xlu0 %v1035, 96
    %v1256 = vpop.permute.xlu0 %1255
    %1259 = vrot.lane.b32.xlu0 %v1048, 96
    %v1260 = vpop.permute.xlu0 %1259
    %1263 = vrot.lane.b32.xlu0 %v1061, 96
    %v1264 = vpop.permute.xlu0 %1263
    %v1266 = vsel %vm1143, %v684, %v1171
    %v1267 = vsel %vm1145, %v1266, %v1202
    %v1268 = vsel %vm1147, %v1267, %v1229
    %v1269 = vsel %vm1149, %v1268, %v1252
    %v1270 = vsel %vm1151, %v1269, %v1256
    %v1271 = vsel %vm1153, %v1270, %v1260
    %v1272 = vsel %vm1155, %v1271, %v1264
    %1274 = vrot.lane.b32.xlu0 %v1075, 88
    %v1275 = vpop.permute.xlu0 %1274
    %1278 = vrot.lane.b32.xlu0 %v1088, 88
    %v1279 = vpop.permute.xlu0 %1278
    %1282 = vrot.lane.b32.xlu0 %v1101, 88
    %v1283 = vpop.permute.xlu0 %1282
    %v1285 = vsel %vm1143, %v713, %v1175
    %v1286 = vsel %vm1145, %v1285, %v1206
    %v1287 = vsel %vm1147, %v1286, %v1233
    %v1288 = vsel %vm1149, %v1287, %v1256
    %v1289 = vsel %vm1151, %v1288, %v1275
    %v1290 = vsel %vm1153, %v1289, %v1279
    %v1291 = vsel %vm1155, %v1290, %v1283
    %1293 = vrot.lane.b32.xlu0 %v1115, 80
    %v1294 = vpop.permute.xlu0 %1293
    %1297 = vrot.lane.b32.xlu0 %v1128, 80
    %v1298 = vpop.permute.xlu0 %1297
    %v1300 = vsel %vm1143, %v742, %v1179
    %v1301 = vsel %vm1145, %v1300, %v1210
    %v1302 = vsel %vm1147, %v1301, %v1237
    %v1303 = vsel %vm1149, %v1302, %v1260
    %v1304 = vsel %vm1151, %v1303, %v1279
    %v1305 = vsel %vm1153, %v1304, %v1294
    %v1306 = vsel %vm1155, %v1305, %v1298
    %1308 = vrot.lane.b32.xlu0 %v1142, 72
    %v1309 = vpop.permute.xlu0 %1308
    %v1311 = vsel %vm1143, %v771, %v1183
    %v1312 = vsel %vm1145, %v1311, %v1214
    %v1313 = vsel %vm1147, %v1312, %v1241
    %v1314 = vsel %vm1149, %v1313, %v1264
    %v1315 = vsel %vm1151, %v1314, %v1283
    %v1316 = vsel %vm1153, %v1315, %v1298
    %v1317 = vsel %vm1155, %v1316, %v1309
    %v1318 = vsel %vm123, %v1156, -inf
    %v1319 = vrot.slane %v1318, 4
    %v1320 = vmax.f32 %v1318, %v1319
    %v1321 = vrot.slane %v1320, 2
    %v1322 = vmax.f32 %v1320, %v1321
    %v1323 = vrot.slane %v1322, 1
    %v1324 = vmax.f32 %v1322, %v1323
    %v1325 = vsel %vm123, %v1191, -inf
    %v1326 = vrot.slane %v1325, 4
    %v1327 = vmax.f32 %v1325, %v1326
    %v1328 = vrot.slane %v1327, 2
    %v1329 = vmax.f32 %v1327, %v1328
    %v1330 = vrot.slane %v1329, 1
    %v1331 = vmax.f32 %v1329, %v1330
    %v1332 = vsel %vm123, %v1222, -inf
    %v1333 = vrot.slane %v1332, 4
    %v1334 = vmax.f32 %v1332, %v1333
    %v1335 = vrot.slane %v1334, 2
    %v1336 = vmax.f32 %v1334, %v1335
    %v1337 = vrot.slane %v1336, 1
    %v1338 = vmax.f32 %v1336, %v1337
    %v1339 = vsel %vm123, %v1249, -inf
    %v1340 = vrot.slane %v1339, 4
    %v1341 = vmax.f32 %v1339, %v1340
    %v1342 = vrot.slane %v1341, 2
    %v1343 = vmax.f32 %v1341, %v1342
    %v1344 = vrot.slane %v1343, 1
    %v1345 = vmax.f32 %v1343, %v1344
    %v1346 = vsel %vm123, %v1272, -inf
    %v1347 = vrot.slane %v1346, 4
    %v1348 = vmax.f32 %v1346, %v1347
    %v1349 = vrot.slane %v1348, 2
    %v1350 = vmax.f32 %v1348, %v1349
    %v1351 = vrot.slane %v1350, 1
    %v1352 = vmax.f32 %v1350, %v1351
    %v1353 = vsel %vm123, %v1291, -inf
    %v1354 = vrot.slane %v1353, 4
    %v1355 = vmax.f32 %v1353, %v1354
    %v1356 = vrot.slane %v1355, 2
    %v1357 = vmax.f32 %v1355, %v1356
    %v1358 = vrot.slane %v1357, 1
    %v1359 = vmax.f32 %v1357, %v1358
    %v1360 = vsel %vm123, %v1306, -inf
    %v1361 = vrot.slane %v1360, 4
    %v1362 = vmax.f32 %v1360, %v1361
    %v1363 = vrot.slane %v1362, 2
    %v1364 = vmax.f32 %v1362, %v1363
    %v1365 = vrot.slane %v1364, 1
    %v1366 = vmax.f32 %v1364, %v1365
    %v1367 = vsel %vm123, %v1317, -inf
    %v1368 = vrot.slane %v1367, 4
    %v1369 = vmax.f32 %v1367, %v1368
    %v1370 = vrot.slane %v1369, 2
    %v1371 = vmax.f32 %v1369, %v1370
    %v1372 = vrot.slane %v1371, 1
    %v1373 = vmax.f32 %v1371, %v1372
    %v1374 = vsub.f32 %v1156, %v1324
    %v1375 = vsub.f32 %v1191, %v1331
    %v1376 = vsub.f32 %v1222, %v1338
    %v1377 = vsub.f32 %v1249, %v1345
    %v1378 = vsub.f32 %v1272, %v1352
    %v1379 = vsub.f32 %v1291, %v1359
    %v1380 = vsub.f32 %v1306, %v1366
    %v1381 = vsub.f32 %v1317, %v1373
    %v1382 = vmul.f32 %v1374, 1.442695
    %v1383 = vpow.pop %v1382
    %v1384 = vmul.f32 %v1375, 1.442695
    %v1385 = vpow.pop %v1384
    %v1386 = vmul.f32 %v1376, 1.442695
    %v1387 = vpow.pop %v1386
    %v1388 = vmul.f32 %v1377, 1.442695
    %v1389 = vpow.pop %v1388
    %v1390 = vmul.f32 %v1378, 1.442695
    %v1391 = vpow.pop %v1390
    %v1392 = vmul.f32 %v1379, 1.442695
    %v1393 = vpow.pop %v1392
    %v1394 = vmul.f32 %v1380, 1.442695
    %v1395 = vpow.pop %v1394
    %v1396 = vmul.f32 %v1381, 1.442695
    %v1397 = vpow.pop %v1396
    %v1398 = vsel %vm123, %v1383, 0.0
    %v1399 = vrot.slane %v1398, 4
    %v1400 = vadd.f32 %v1398, %v1399
    %v1401 = vrot.slane %v1400, 2
    %v1402 = vadd.f32 %v1400, %v1401
    %v1403 = vrot.slane %v1402, 1
    %v1404 = vadd.f32 %v1402, %v1403
    %v1405 = vsel %vm123, %v1385, 0.0
    %v1406 = vrot.slane %v1405, 4
    %v1407 = vadd.f32 %v1405, %v1406
    %v1408 = vrot.slane %v1407, 2
    %v1409 = vadd.f32 %v1407, %v1408
    %v1410 = vrot.slane %v1409, 1
    %v1411 = vadd.f32 %v1409, %v1410
    %v1412 = vsel %vm123, %v1387, 0.0
    %v1413 = vrot.slane %v1412, 4
    %v1414 = vadd.f32 %v1412, %v1413
    %v1415 = vrot.slane %v1414, 2
    %v1416 = vadd.f32 %v1414, %v1415
    %v1417 = vrot.slane %v1416, 1
    %v1418 = vadd.f32 %v1416, %v1417
    %v1419 = vsel %vm123, %v1389, 0.0
    %v1420 = vrot.slane %v1419, 4
    %v1421 = vadd.f32 %v1419, %v1420
    %v1422 = vrot.slane %v1421, 2
    %v1423 = vadd.f32 %v1421, %v1422
    %v1424 = vrot.slane %v1423, 1
    %v1425 = vadd.f32 %v1423, %v1424
    %v1426 = vsel %vm123, %v1391, 0.0
    %v1427 = vrot.slane %v1426, 4
    %v1428 = vadd.f32 %v1426, %v1427
    %v1429 = vrot.slane %v1428, 2
    %v1430 = vadd.f32 %v1428, %v1429
    %v1431 = vrot.slane %v1430, 1
    %v1432 = vadd.f32 %v1430, %v1431
    %v1433 = vsel %vm123, %v1393, 0.0
    %v1434 = vrot.slane %v1433, 4
    %v1435 = vadd.f32 %v1433, %v1434
    %v1436 = vrot.slane %v1435, 2
    %v1437 = vadd.f32 %v1435, %v1436
    %v1438 = vrot.slane %v1437, 1
    %v1439 = vadd.f32 %v1437, %v1438
    %v1440 = vsel %vm123, %v1395, 0.0
    %v1441 = vrot.slane %v1440, 4
    %v1442 = vadd.f32 %v1440, %v1441
    %v1443 = vrot.slane %v1442, 2
    %v1444 = vadd.f32 %v1442, %v1443
    %v1445 = vrot.slane %v1444, 1
    %v1446 = vadd.f32 %v1444, %v1445
    %v1447 = vsel %vm123, %v1397, 0.0
    %v1448 = vrot.slane %v1447, 4
    %v1449 = vadd.f32 %v1447, %v1448
    %v1450 = vrot.slane %v1449, 2
    %v1451 = vadd.f32 %v1449, %v1450
    %v1452 = vrot.slane %v1451, 1
    %v1453 = vadd.f32 %v1451, %v1452
    %v1454 = vrcp.pop %v1404
    %v1455 = vrcp.pop %v1411
    %v1456 = vrcp.pop %v1418
    %v1457 = vrcp.pop %v1425
    %v1458 = vrcp.pop %v1432
    %v1459 = vrcp.pop %v1439
    %v1460 = vrcp.pop %v1446
    %v1461 = vrcp.pop %v1453
    %v1462 = vmul.f32 %v1404, %v1454
    %v1463 = vmul.f32 %v1411, %v1455
    %v1464 = vmul.f32 %v1418, %v1456
    %v1465 = vmul.f32 %v1425, %v1457
    %v1466 = vmul.f32 %v1432, %v1458
    %v1467 = vmul.f32 %v1439, %v1459
    %v1468 = vmul.f32 %v1446, %v1460
    %v1469 = vmul.f32 %v1453, %v1461
    %v1470 = vsub.f32 2.0, %v1462
    %v1471 = vsub.f32 2.0, %v1463
    %v1472 = vsub.f32 2.0, %v1464
    %v1473 = vsub.f32 2.0, %v1465
    %v1474 = vsub.f32 2.0, %v1466
    %v1475 = vsub.f32 2.0, %v1467
    %v1476 = vsub.f32 2.0, %v1468
    %v1477 = vsub.f32 2.0, %v1469
    %v1478 = vmul.f32 %v1454, %v1470
    %v1479 = vmul.f32 %v1455, %v1471
    %v1480 = vmul.f32 %v1456, %v1472
    %v1481 = vmul.f32 %v1457, %v1473
    %v1482 = vmul.f32 %v1458, %v1474
    %v1483 = vmul.f32 %v1459, %v1475
    %v1484 = vmul.f32 %v1460, %v1476
    %v1485 = vmul.f32 %v1461, %v1477
    %v1486 = vmul.f32 %v1383, %v1478
    %v1487 = vmul.f32 %v1385, %v1479
    %v1488 = vmul.f32 %v1387, %v1480
    %v1489 = vmul.f32 %v1389, %v1481
    %v1490 = vmul.f32 %v1391, %v1482
    %v1491 = vmul.f32 %v1393, %v1483
    %v1492 = vmul.f32 %v1395, %v1484
    %v1493 = vmul.f32 %v1397, %v1485
    %1494 = vst.msk [vmem:[#allocation2] sm:$0xff] %vm123, %v1486
    %1495 = vst.msk [vmem:[#allocation2 + $0x8] sm:$0xff] %vm123, %v1487
    %1496 = vst.msk [vmem:[#allocation2 + $0x10] sm:$0xff] %vm123, %v1488
    %1497 = vst.msk [vmem:[#allocation2 + $0x18] sm:$0xff] %vm123, %v1489
    %1498 = vst.msk [vmem:[#allocation2 + $0x20] sm:$0xff] %vm123, %v1490
    %1499 = vst.msk [vmem:[#allocation2 + $0x28] sm:$0xff] %vm123, %v1491
    %1500 = vst.msk [vmem:[#allocation2 + $0x30] sm:$0xff] %vm123, %v1492
    %1501 = vst.msk [vmem:[#allocation2 + $0x38] sm:$0xff] %vm123, %v1493
    // Predicated region
    $region30: #{tpu_custom_call.1} parent=1 // pred_check
      _
    $region31: #{tpu_custom_call.1} parent=1 // pred_check_branch
      %1503 = sbr.rel (0) target = $region33
    $region32: #{tpu_custom_call.1} parent=1 // pred_region
      %s1505 = ssub.s32 1024, 1024
      %1506 = vsyncadd [#allocation3], %s1505
      %s1507 = sshll.u32 [#allocation2], 4
      %s1508 = int_to_ptr.vmem [resolvable:$true] %s1507
      %1513 = dma.vmem_to_hbm [thread:$0]  %s1508, 1024, %s7, [#allocation3], 128, 128, 8
    $region33: #{tpu_custom_call.1} parent=1 // pred_fallthru
      _
    // Predicated region
    $region34: #{tpu_custom_call.1} parent=1 // pred_check
      _
    $region35: #{tpu_custom_call.1} parent=1 // pred_check_branch
      %1515 = sbr.rel (0) target = $region37
    $region36: #{tpu_custom_call.1} parent=1 // pred_region
      %1516 = dma.done [#allocation3], 1024
    $region37: #{tpu_custom_call.1} parent=1 // pred_fallthru
      _
    %1517 = vsyncpa [#allocation3], 1

</llo_original>
